<compile_context>
chip_gen: v7x
topology: tpu7x:2x2x1
jax: 0.10.0
libtpu: 0.0.40
codegen_flags: <defaults>
</compile_context>

<pallas_src>
import jax
import jax.numpy as jnp
import numpy as np
from jax.experimental import pallas as pl
from jax.experimental.pallas import tpu as pltpu


# --------------------------- fused MultiScaleConv kernel -------------------------------

def _msc_kernel(x_ref, wcat_ref, bcat_ref, wdw_ref, bdw_ref, w2_ref, b2_ref,
                o_ref, halo_ref):
    # x_ref    : (1, tT, F, Cin)        o_ref   : (1, tT, F, Cout)
    # wcat_ref : (Cin, 2*Cout)  [w1|wsk] bcat_ref: (1, 2*Cout)  [b1|bsk]
    # wdw_ref  : (9, Cout)               halo_ref: (2, F, Cout)  (T-causal carry)
    ti = pl.program_id(1)
    _, tT, F, Cin = x_ref.shape
    Cout = o_ref.shape[-1]

    # ---- fused entry 1x1 convs: one MXU push for conv-branch + skip-branch ------------
    x2 = x_ref[...].reshape(tT * F, Cin)
    ycat = jnp.dot(x2, wcat_ref[...], preferred_element_type=jnp.float32) + bcat_ref[...]
    y1 = ycat[:, :Cout].reshape(tT, F, Cout)           # conv-branch entry (f32)
    skip = ycat[:, Cout:]                               # skip branch (tT*F, Cout)

    # ---- causal T padding (top=2, bottom=0) via 2-row halo carried across T-tiles -----
    @pl.when(ti == 0)
    def _():
        halo_ref[...] = jnp.zeros_like(halo_ref)
    top = halo_ref[...]                                  # (2, F, Cout)
    halo_ref[...] = y1[tT - 2:tT]                        # carry for next T-tile

    y1_full = jnp.concatenate([top, y1], axis=0)         # (tT+2, F, Cout), in-register

    # ---- symmetric F padding (1, 1): three in-register shifted views (no VMEM slab) ---
    zc = jnp.zeros((tT + 2, 1, Cout), jnp.float32)
    shifts = (
        jnp.concatenate([zc, y1_full[:, :F - 1, :]], axis=1),   # kf=0: column f-1
        y1_full,                                                  # kf=1: column f
        jnp.concatenate([y1_full[:, 1:, :], zc], axis=1),        # kf=2: column f+1
    )

    # ---- depthwise 3x3: 9-term shift-FMA (VPU), per-tap weight row from (9, Cout) -----
    acc = jnp.zeros((tT, F, Cout), jnp.float32)
    for kf in range(3):
        xs = shifts[kf]
        for kt in range(3):
            w_k = wdw_ref[3 * kt + kf, :]                # (Cout,)
            acc = acc + xs[kt:kt + tT] * w_k[None, None, :]

    # ---- output 1x1 conv + skip multiply, all still in VMEM ----------------------------
    dw2 = acc.reshape(tT * F, Cout) + bdw_ref[...]
    y2 = jnp.dot(dw2.astype(w2_ref.dtype), w2_ref[...],
                 preferred_element_type=jnp.float32) + b2_ref[...]
    o_ref[...] = (y2 * skip).reshape(1, tT, F, Cout).astype(o_ref.dtype)


# --------------------------- t_tile selection (VMEM budget) -----------------------------

_VMEM_STEP_BUDGET = 24 * 1024 * 1024     # per-step working-set budget (safe on v5e/v6e/v7x)
_VMEM_LIMIT_BYTES = 32 * 1024 * 1024     # scoped VMEM limit: raises v5e's 16 MiB default,
                                         # matches v6e default, inside v7x's 64 MiB physical


def _pick_t_tile(T, F, Cin, Cout, x_itemsize, w_itemsize, budget_bytes):
    """Largest divisor of T (>= 2) whose per-step VMEM estimate fits the budget."""
    def est(tT):
        xb = 2 * tT * F * Cin * x_itemsize                     # x tile, double-buffered
        ob = 2 * tT * F * Cout * 4                             # out tile, double-buffered
        wb = 2 * ((Cin * 2 * Cout + Cout * Cout) * w_itemsize  # matmul weights
                  + (2 * Cout + 9 * Cout + 2 * Cout) * 4)      # biases + dw taps
        halo = 2 * F * Cout * 4                                # carry scratch
        tmp = 8 * (tT + 2) * F * Cout * 4                      # in-kernel temporaries
        return xb + ob + wb + halo + tmp
    divisors = [d for d in range(2, T + 1) if T % d == 0]
    for d in sorted(divisors, reverse=True):
        if est(d) <= budget_bytes:
            return d
    return divisors[0] if divisors else T


# --------------------------- wrappers ----------------------------------------------------

def multi_scale_conv_forward_nhwc(x_nhwc, p, *, t_tile=None,
                                  matmul_dtype=jnp.float32,
                                  vmem_limit_bytes=_VMEM_LIMIT_BYTES):
    """Channels-last entry point.  x_nhwc: (B, T, F, Cin) -> (B, T, F, Cout).

    Params `p` are channels-last: w1/wsk: (Cin, Cout), w2: (Cout, Cout),
    wdw: (3, 3, Cout), biases: (Cout,).  `matmul_dtype` controls the MXU input dtype
    (f32 for exact module semantics, bf16 to halve x DMA bytes); accumulation is f32.
    """
    B, T, F, Cin = x_nhwc.shape
    Cout = p['w1'].shape[1]

    x = x_nhwc.astype(matmul_dtype)
    w_itemsize = jnp.dtype(matmul_dtype).itemsize

    if t_tile is None:
        t_tile = _pick_t_tile(T, F, Cin, Cout, w_itemsize, w_itemsize, _VMEM_STEP_BUDGET)
    assert T % t_tile == 0 and t_tile >= 2, "t_tile must divide T and be >= 2"
    nT = T // t_tile

    # Pack parameters (in real use these would be pre-packed once, outside the step fn).
    w_cat = jnp.concatenate([p['w1'], p['wsk']], axis=1).astype(matmul_dtype)   # (Cin, 2*Cout)
    b_cat = jnp.concatenate([p['b1'], p['bsk']]).reshape(1, 2 * Cout).astype(jnp.float32)
    wdw = p['wdw'].reshape(9, Cout).astype(jnp.float32)                          # (9, Cout)
    bdw = p['bdw'].reshape(1, Cout).astype(jnp.float32)
    w2 = p['w2'].astype(matmul_dtype)
    b2 = p['b2'].reshape(1, Cout).astype(jnp.float32)

    return pl.pallas_call(
        _msc_kernel,
        out_shape=jax.ShapeDtypeStruct((B, T, F, Cout), jnp.float32),
        grid=(B, nT),
        in_specs=[
            pl.BlockSpec((1, t_tile, F, Cin), lambda b, t: (b, t, 0, 0)),
            pl.BlockSpec((Cin, 2 * Cout), lambda b, t: (0, 0)),
            pl.BlockSpec((1, 2 * Cout), lambda b, t: (0, 0)),
            pl.BlockSpec((9, Cout), lambda b, t: (0, 0)),
            pl.BlockSpec((1, Cout), lambda b, t: (0, 0)),
            pl.BlockSpec((Cout, Cout), lambda b, t: (0, 0)),
            pl.BlockSpec((1, Cout), lambda b, t: (0, 0)),
        ],
        out_specs=pl.BlockSpec((1, t_tile, F, Cout), lambda b, t: (b, t, 0, 0)),
        scratch_shapes=[
            pltpu.VMEM((2, F, Cout), jnp.float32),    # 2-row causal T halo carry
        ],
        compiler_params=pltpu.CompilerParams(
            # T axis must stay "arbitrary": the halo carry is a cross-iteration
            # dependency along T (batch axis is independent and megacore-splittable).
            dimension_semantics=("parallel", "arbitrary"),
            vmem_limit_bytes=vmem_limit_bytes),
    )(x, w_cat, b_cat, wdw, bdw, w2, b2)


def multi_scale_conv_forward(x_nchw, p, **kwargs):
    """NCHW adapter matching the PyTorch module: (B, Cin, T, F) -> (B, Cout, T, F).

    If the surrounding model is kept channels-last, call multi_scale_conv_forward_nhwc
    directly and both HBM transposes below disappear.
    """
    x = jnp.transpose(x_nchw, (0, 2, 3, 1))            # (B, T, F, Cin)
    y = multi_scale_conv_forward_nhwc(x, p, **kwargs)  # (B, T, F, Cout)
    return jnp.transpose(y, (0, 3, 1, 2))              # (B, Cout, T, F)


# --------------------------- deterministic parameter init ------------------------------

def init_params(key, Cin, Cout, scale=0.1):
    ks = jax.random.split(key, 8)
    return {
        'w1':  scale * jax.random.normal(ks[0], (Cin, Cout), jnp.float32),
        'b1':  scale * jax.random.normal(ks[1], (Cout,), jnp.float32),
        'wdw': scale * jax.random.normal(ks[2], (3, 3, Cout), jnp.float32),
        'bdw': scale * jax.random.normal(ks[3], (Cout,), jnp.float32),
        'w2':  scale * jax.random.normal(ks[4], (Cout, Cout), jnp.float32),
        'b2':  scale * jax.random.normal(ks[5], (Cout,), jnp.float32),
        'wsk': scale * jax.random.normal(ks[6], (Cin, Cout), jnp.float32),
        'bsk': scale * jax.random.normal(ks[7], (Cout,), jnp.float32),
    }


# --------------------------- pure-JAX reference (mirrors the PyTorch module) ------------

def ref_forward(x, p):
    hi = jax.lax.Precision.HIGHEST

    def pw1x1(x, w, b):
        return jnp.einsum('bitf,io->botf', x, w, precision=hi) + b[None, :, None, None]

    def dw3x3(x, w_hwc, b):
        Cc = x.shape[1]
        xp = jnp.pad(x, ((0, 0), (0, 0), (2, 0), (1, 1)))   # ZeroPad2d([1,1,2,0])
        w_oihw = jnp.transpose(w_hwc, (2, 0, 1))[:, None, :, :]
        out = jax.lax.conv_general_dilated(
            xp, w_oihw, window_strides=(1, 1), padding='VALID',
            dimension_numbers=('NCHW', 'OIHW', 'NCHW'),
            feature_group_count=Cc, precision=hi)
        return out + b[None, :, None, None]

    y = pw1x1(x, p['w1'], p['b1'])
    y = dw3x3(y, p['wdw'], p['bdw'])
    y = pw1x1(y, p['w2'], p['b2'])
    s = pw1x1(x, p['wsk'], p['bsk'])
    return y * s


# ----------------------------------------------------------------------------------------

if __name__ == "__main__":
    B, Cin, Cout, T, F = 2, 32, 64, 16, 16
    key = jax.random.PRNGKey(0)
    kx, kp = jax.random.split(key)
    x = jax.random.normal(kx, (B, Cin, T, F), jnp.float32)
    params = init_params(kp, Cin, Cout)
    y_ref = np.asarray(ref_forward(x, params))

    # 1) f32 path, auto t_tile (VMEM-budget pick -> whole T fits here, single T-tile).
    fwd = jax.jit(lambda xx, pp: multi_scale_conv_forward(xx, pp))
    y = jax.block_until_ready(fwd(x, params))
    assert y.shape == (B, Cout, T, F), y.shape
    np.testing.assert_allclose(np.asarray(y), y_ref, atol=2e-3, rtol=2e-3)

    # 2) f32 path, t_tile=8 -> 2 T-tiles per batch, exercising the causal halo carry.
    fwd8 = jax.jit(lambda xx, pp: multi_scale_conv_forward(xx, pp, t_tile=8))
    y8 = jax.block_until_ready(fwd8(x, params))
    np.testing.assert_allclose(np.asarray(y8), y_ref, atol=2e-3, rtol=2e-3)

    # 3) bf16 MXU-input path (x / w1|wsk / w2 in bf16, f32 accumulation); looser tol.
    fwd_bf = jax.jit(lambda xx, pp: multi_scale_conv_forward(
        xx, pp, t_tile=8, matmul_dtype=jnp.bfloat16))
    yb = jax.block_until_ready(fwd_bf(x, params))
    np.testing.assert_allclose(np.asarray(yb), y_ref, atol=3e-2, rtol=3e-2)

    print("KERNEL_OK")
</pallas_src>

<mosaic_0001>
module attributes {stable_mosaic.version = 11 : i64} {
  func.func @_msc_kernel(%arg0: i32, %arg1: i32, %arg2: memref<1x16x16x32xf32, #tpu.memory_space<vmem>>, %arg3: memref<32x128xf32, #tpu.memory_space<vmem>>, %arg4: memref<1x128xf32, #tpu.memory_space<vmem>>, %arg5: memref<9x64xf32, #tpu.memory_space<vmem>>, %arg6: memref<1x64xf32, #tpu.memory_space<vmem>>, %arg7: memref<64x64xf32, #tpu.memory_space<vmem>>, %arg8: memref<1x64xf32, #tpu.memory_space<vmem>>, %arg9: memref<1x16x16x64xf32, #tpu.memory_space<vmem>>, %arg10: memref<2x16x64xf32, #tpu.memory_space<vmem>>) attributes {dimension_semantics = [#tpu.dimension_semantics<parallel>, #tpu.dimension_semantics<arbitrary>], iteration_bounds = array<i64: 2, 1>, scalar_prefetch = 0 : i64, scratch_operands = 1 : i64, tpu.core_type = #tpu.core_type<tc>, window_params = [{transform_indices = @transform_0, window_bounds = array<i64: 1, 16, 16, 32>}, {pipeline_mode = #tpu.pipeline_mode<synchronous>, transform_indices = @transform_1, window_bounds = array<i64: 32, 128>}, {pipeline_mode = #tpu.pipeline_mode<synchronous>, transform_indices = @transform_2, window_bounds = array<i64: 1, 128>}, {pipeline_mode = #tpu.pipeline_mode<synchronous>, transform_indices = @transform_3, window_bounds = array<i64: 9, 64>}, {pipeline_mode = #tpu.pipeline_mode<synchronous>, transform_indices = @transform_4, window_bounds = array<i64: 1, 64>}, {pipeline_mode = #tpu.pipeline_mode<synchronous>, transform_indices = @transform_5, window_bounds = array<i64: 64, 64>}, {pipeline_mode = #tpu.pipeline_mode<synchronous>, transform_indices = @transform_6, window_bounds = array<i64: 1, 64>}, {transform_indices = @transform_7, window_bounds = array<i64: 1, 16, 16, 64>}]} {
    %c0 = arith.constant 0 : index
    %c0_0 = arith.constant 0 : index
    %c0_1 = arith.constant 0 : index
    %c0_2 = arith.constant 0 : index
    %0 = vector.load %arg2[%c0, %c0_0, %c0_1, %c0_2] : memref<1x16x16x32xf32, #tpu.memory_space<vmem>>, vector<1x16x16x32xf32>
    %1 = vector.shape_cast %0 : vector<1x16x16x32xf32> to vector<256x32xf32>
    %c0_3 = arith.constant 0 : index
    %c0_4 = arith.constant 0 : index
    %2 = vector.load %arg3[%c0_3, %c0_4] : memref<32x128xf32, #tpu.memory_space<vmem>>, vector<32x128xf32>
    %cst = arith.constant dense<0.000000e+00> : vector<256x128xf32>
    %3 = tpu.matmul %1, %2, %cst {dimension_numbers = #tpu.dot_dimension_numbers<[1], [0], [0], [1], [0, 0, 1, 1], [], []>} : vector<256x32xf32>, vector<32x128xf32>, vector<256x128xf32> -> vector<256x128xf32>
    %c0_5 = arith.constant 0 : index
    %c0_6 = arith.constant 0 : index
    %4 = vector.load %arg4[%c0_5, %c0_6] : memref<1x128xf32, #tpu.memory_space<vmem>>, vector<1x128xf32>
    %5 = vector.broadcast %4 : vector<1x128xf32> to vector<256x128xf32>
    %6 = arith.addf %3, %5 : vector<256x128xf32>
    %7 = vector.extract_strided_slice %6 {offsets = [0, 0], sizes = [256, 64], strides = [1, 1]} : vector<256x128xf32> to vector<256x64xf32>
    %8 = vector.shape_cast %7 : vector<256x64xf32> to vector<16x16x64xf32>
    %9 = vector.extract_strided_slice %6 {offsets = [0, 64], sizes = [256, 64], strides = [1, 1]} : vector<256x128xf32> to vector<256x64xf32>
    %c0_i32 = arith.constant 0 : i32
    %10 = arith.cmpi eq, %arg1, %c0_i32 : i32
    %11 = arith.extui %10 : i1 to i32
    %c0_i32_7 = arith.constant 0 : i32
    %12 = arith.cmpi ne, %11, %c0_i32_7 : i32
    scf.if %12 {
      %cst_37 = arith.constant 0.000000e+00 : f32
      %98 = vector.broadcast %cst_37 : f32 to vector<2x16x64xf32>
      %c0_38 = arith.constant 0 : index
      %c0_39 = arith.constant 0 : index
      %c0_40 = arith.constant 0 : index
      %99 = vector.load %arg10[%c0_38, %c0_39, %c0_40] : memref<2x16x64xf32, #tpu.memory_space<vmem>>, vector<2x16x64xf32>
      tpu.vector_store %arg10[%c0_38, %c0_39, %c0_40], %98 {strides = array<i32>} : memref<2x16x64xf32, #tpu.memory_space<vmem>>, vector<2x16x64xf32>,
    } else {
    }
    %c0_8 = arith.constant 0 : index
    %c0_9 = arith.constant 0 : index
    %c0_10 = arith.constant 0 : index
    %13 = vector.load %arg10[%c0_8, %c0_9, %c0_10] : memref<2x16x64xf32, #tpu.memory_space<vmem>>, vector<2x16x64xf32>
    %14 = vector.extract_strided_slice %8 {offsets = [14, 0, 0], sizes = [2, 16, 64], strides = [1, 1, 1]} : vector<16x16x64xf32> to vector<2x16x64xf32>
    %c0_11 = arith.constant 0 : index
    %c0_12 = arith.constant 0 : index
    %c0_13 = arith.constant 0 : index
    %15 = vector.load %arg10[%c0_11, %c0_12, %c0_13] : memref<2x16x64xf32, #tpu.memory_space<vmem>>, vector<2x16x64xf32>
    tpu.vector_store %arg10[%c0_11, %c0_12, %c0_13], %14 {strides = array<i32>} : memref<2x16x64xf32, #tpu.memory_space<vmem>>, vector<2x16x64xf32>,
    %16 = tpu.concatenate %13, %8 in 0 : vector<2x16x64xf32>, vector<16x16x64xf32> -> vector<18x16x64xf32>
    %cst_14 = arith.constant 0.000000e+00 : f32
    %17 = vector.broadcast %cst_14 : f32 to vector<18x1x64xf32>
    %18 = vector.extract_strided_slice %16 {offsets = [0, 0, 0], sizes = [18, 15, 64], strides = [1, 1, 1]} : vector<18x16x64xf32> to vector<18x15x64xf32>
    %19 = tpu.concatenate %17, %18 in 1 : vector<18x1x64xf32>, vector<18x15x64xf32> -> vector<18x16x64xf32>
    %20 = vector.extract_strided_slice %16 {offsets = [0, 1, 0], sizes = [18, 15, 64], strides = [1, 1, 1]} : vector<18x16x64xf32> to vector<18x15x64xf32>
    %21 = tpu.concatenate %20, %17 in 1 : vector<18x15x64xf32>, vector<18x1x64xf32> -> vector<18x16x64xf32>
    %cst_15 = arith.constant 0.000000e+00 : f32
    %22 = vector.broadcast %cst_15 : f32 to vector<16x16x64xf32>
    %c0_16 = arith.constant 0 : index
    %c0_17 = arith.constant 0 : index
    %23 = vector.load %arg5[%c0_16, %c0_17] : memref<9x64xf32, #tpu.memory_space<vmem>>, vector<1x64xf32>
    %24 = vector.shape_cast %23 : vector<1x64xf32> to vector<64xf32>
    %25 = vector.extract_strided_slice %19 {offsets = [0, 0, 0], sizes = [16, 16, 64], strides = [1, 1, 1]} : vector<18x16x64xf32> to vector<16x16x64xf32>
    %26 = vector.shape_cast %24 : vector<64xf32> to vector<1x1x64xf32>
    %27 = vector.broadcast %26 : vector<1x1x64xf32> to vector<16x16x64xf32>
    %28 = arith.mulf %25, %27 : vector<16x16x64xf32>
    %29 = arith.addf %22, %28 : vector<16x16x64xf32>
    %c3 = arith.constant 3 : index
    %c0_18 = arith.constant 0 : index
    %30 = vector.load %arg5[%c3, %c0_18] : memref<9x64xf32, #tpu.memory_space<vmem>>, vector<1x64xf32>
    %31 = vector.shape_cast %30 : vector<1x64xf32> to vector<64xf32>
    %32 = vector.extract_strided_slice %19 {offsets = [1, 0, 0], sizes = [16, 16, 64], strides = [1, 1, 1]} : vector<18x16x64xf32> to vector<16x16x64xf32>
    %33 = vector.shape_cast %31 : vector<64xf32> to vector<1x1x64xf32>
    %34 = vector.broadcast %33 : vector<1x1x64xf32> to vector<16x16x64xf32>
    %35 = arith.mulf %32, %34 : vector<16x16x64xf32>
    %36 = arith.addf %29, %35 : vector<16x16x64xf32>
    %c6 = arith.constant 6 : index
    %c0_19 = arith.constant 0 : index
    %37 = vector.load %arg5[%c6, %c0_19] : memref<9x64xf32, #tpu.memory_space<vmem>>, vector<1x64xf32>
    %38 = vector.shape_cast %37 : vector<1x64xf32> to vector<64xf32>
    %39 = vector.extract_strided_slice %19 {offsets = [2, 0, 0], sizes = [16, 16, 64], strides = [1, 1, 1]} : vector<18x16x64xf32> to vector<16x16x64xf32>
    %40 = vector.shape_cast %38 : vector<64xf32> to vector<1x1x64xf32>
    %41 = vector.broadcast %40 : vector<1x1x64xf32> to vector<16x16x64xf32>
    %42 = arith.mulf %39, %41 : vector<16x16x64xf32>
    %43 = arith.addf %36, %42 : vector<16x16x64xf32>
    %c1 = arith.constant 1 : index
    %c0_20 = arith.constant 0 : index
    %44 = vector.load %arg5[%c1, %c0_20] : memref<9x64xf32, #tpu.memory_space<vmem>>, vector<1x64xf32>
    %45 = vector.shape_cast %44 : vector<1x64xf32> to vector<64xf32>
    %46 = vector.extract_strided_slice %16 {offsets = [0, 0, 0], sizes = [16, 16, 64], strides = [1, 1, 1]} : vector<18x16x64xf32> to vector<16x16x64xf32>
    %47 = vector.shape_cast %45 : vector<64xf32> to vector<1x1x64xf32>
    %48 = vector.broadcast %47 : vector<1x1x64xf32> to vector<16x16x64xf32>
    %49 = arith.mulf %46, %48 : vector<16x16x64xf32>
    %50 = arith.addf %43, %49 : vector<16x16x64xf32>
    %c4 = arith.constant 4 : index
    %c0_21 = arith.constant 0 : index
    %51 = vector.load %arg5[%c4, %c0_21] : memref<9x64xf32, #tpu.memory_space<vmem>>, vector<1x64xf32>
    %52 = vector.shape_cast %51 : vector<1x64xf32> to vector<64xf32>
    %53 = vector.extract_strided_slice %16 {offsets = [1, 0, 0], sizes = [16, 16, 64], strides = [1, 1, 1]} : vector<18x16x64xf32> to vector<16x16x64xf32>
    %54 = vector.shape_cast %52 : vector<64xf32> to vector<1x1x64xf32>
    %55 = vector.broadcast %54 : vector<1x1x64xf32> to vector<16x16x64xf32>
    %56 = arith.mulf %53, %55 : vector<16x16x64xf32>
    %57 = arith.addf %50, %56 : vector<16x16x64xf32>
    %c7 = arith.constant 7 : index
    %c0_22 = arith.constant 0 : index
    %58 = vector.load %arg5[%c7, %c0_22] : memref<9x64xf32, #tpu.memory_space<vmem>>, vector<1x64xf32>
    %59 = vector.shape_cast %58 : vector<1x64xf32> to vector<64xf32>
    %60 = vector.extract_strided_slice %16 {offsets = [2, 0, 0], sizes = [16, 16, 64], strides = [1, 1, 1]} : vector<18x16x64xf32> to vector<16x16x64xf32>
    %61 = vector.shape_cast %59 : vector<64xf32> to vector<1x1x64xf32>
    %62 = vector.broadcast %61 : vector<1x1x64xf32> to vector<16x16x64xf32>
    %63 = arith.mulf %60, %62 : vector<16x16x64xf32>
    %64 = arith.addf %57, %63 : vector<16x16x64xf32>
    %c2 = arith.constant 2 : index
    %c0_23 = arith.constant 0 : index
    %65 = vector.load %arg5[%c2, %c0_23] : memref<9x64xf32, #tpu.memory_space<vmem>>, vector<1x64xf32>
    %66 = vector.shape_cast %65 : vector<1x64xf32> to vector<64xf32>
    %67 = vector.extract_strided_slice %21 {offsets = [0, 0, 0], sizes = [16, 16, 64], strides = [1, 1, 1]} : vector<18x16x64xf32> to vector<16x16x64xf32>
    %68 = vector.shape_cast %66 : vector<64xf32> to vector<1x1x64xf32>
    %69 = vector.broadcast %68 : vector<1x1x64xf32> to vector<16x16x64xf32>
    %70 = arith.mulf %67, %69 : vector<16x16x64xf32>
    %71 = arith.addf %64, %70 : vector<16x16x64xf32>
    %c5 = arith.constant 5 : index
    %c0_24 = arith.constant 0 : index
    %72 = vector.load %arg5[%c5, %c0_24] : memref<9x64xf32, #tpu.memory_space<vmem>>, vector<1x64xf32>
    %73 = vector.shape_cast %72 : vector<1x64xf32> to vector<64xf32>
    %74 = vector.extract_strided_slice %21 {offsets = [1, 0, 0], sizes = [16, 16, 64], strides = [1, 1, 1]} : vector<18x16x64xf32> to vector<16x16x64xf32>
    %75 = vector.shape_cast %73 : vector<64xf32> to vector<1x1x64xf32>
    %76 = vector.broadcast %75 : vector<1x1x64xf32> to vector<16x16x64xf32>
    %77 = arith.mulf %74, %76 : vector<16x16x64xf32>
    %78 = arith.addf %71, %77 : vector<16x16x64xf32>
    %c8 = arith.constant 8 : index
    %c0_25 = arith.constant 0 : index
    %79 = vector.load %arg5[%c8, %c0_25] : memref<9x64xf32, #tpu.memory_space<vmem>>, vector<1x64xf32>
    %80 = vector.shape_cast %79 : vector<1x64xf32> to vector<64xf32>
    %81 = vector.extract_strided_slice %21 {offsets = [2, 0, 0], sizes = [16, 16, 64], strides = [1, 1, 1]} : vector<18x16x64xf32> to vector<16x16x64xf32>
    %82 = vector.shape_cast %80 : vector<64xf32> to vector<1x1x64xf32>
    %83 = vector.broadcast %82 : vector<1x1x64xf32> to vector<16x16x64xf32>
    %84 = arith.mulf %81, %83 : vector<16x16x64xf32>
    %85 = arith.addf %78, %84 : vector<16x16x64xf32>
    %86 = vector.shape_cast %85 : vector<16x16x64xf32> to vector<256x64xf32>
    %c0_26 = arith.constant 0 : index
    %c0_27 = arith.constant 0 : index
    %87 = vector.load %arg6[%c0_26, %c0_27] : memref<1x64xf32, #tpu.memory_space<vmem>>, vector<1x64xf32>
    %88 = vector.broadcast %87 : vector<1x64xf32> to vector<256x64xf32>
    %89 = arith.addf %86, %88 : vector<256x64xf32>
    %c0_28 = arith.constant 0 : index
    %c0_29 = arith.constant 0 : index
    %90 = vector.load %arg7[%c0_28, %c0_29] : memref<64x64xf32, #tpu.memory_space<vmem>>, vector<64x64xf32>
    %cst_30 = arith.constant dense<0.000000e+00> : vector<256x64xf32>
    %91 = tpu.matmul %89, %90, %cst_30 {dimension_numbers = #tpu.dot_dimension_numbers<[1], [0], [0], [1], [0, 0, 1, 1], [], []>} : vector<256x64xf32>, vector<64x64xf32>, vector<256x64xf32> -> vector<256x64xf32>
    %c0_31 = arith.constant 0 : index
    %c0_32 = arith.constant 0 : index
    %92 = vector.load %arg8[%c0_31, %c0_32] : memref<1x64xf32, #tpu.memory_space<vmem>>, vector<1x64xf32>
    %93 = vector.broadcast %92 : vector<1x64xf32> to vector<256x64xf32>
    %94 = arith.addf %91, %93 : vector<256x64xf32>
    %95 = arith.mulf %94, %9 : vector<256x64xf32>
    %96 = vector.shape_cast %95 : vector<256x64xf32> to vector<1x16x16x64xf32>
    %c0_33 = arith.constant 0 : index
    %c0_34 = arith.constant 0 : index
    %c0_35 = arith.constant 0 : index
    %c0_36 = arith.constant 0 : index
    %97 = vector.load %arg9[%c0_33, %c0_34, %c0_35, %c0_36] : memref<1x16x16x64xf32, #tpu.memory_space<vmem>>, vector<1x16x16x64xf32>
    tpu.vector_store %arg9[%c0_33, %c0_34, %c0_35, %c0_36], %96 {strides = array<i32>} : memref<1x16x16x64xf32, #tpu.memory_space<vmem>>, vector<1x16x16x64xf32>,
    return
  }
  func.func @transform_0(%arg0: i32, %arg1: i32) -> (i32, i32, i32, i32) {
    %c0_i32 = arith.constant 0 : i32
    %c0_i32_0 = arith.constant 0 : i32
    %c0_i32_1 = arith.constant 0 : i32
    return %arg0, %arg1, %c0_i32, %c0_i32_0 : i32, i32, i32, i32
  }
  func.func @transform_1(%arg0: i32, %arg1: i32) -> (i32, i32) {
    %c0_i32 = arith.constant 0 : i32
    %c0_i32_0 = arith.constant 0 : i32
    %c0_i32_1 = arith.constant 0 : i32
    return %c0_i32, %c0_i32_0 : i32, i32
  }
  func.func @transform_2(%arg0: i32, %arg1: i32) -> (i32, i32) {
    %c0_i32 = arith.constant 0 : i32
    %c0_i32_0 = arith.constant 0 : i32
    %c0_i32_1 = arith.constant 0 : i32
    return %c0_i32, %c0_i32_0 : i32, i32
  }
  func.func @transform_3(%arg0: i32, %arg1: i32) -> (i32, i32) {
    %c0_i32 = arith.constant 0 : i32
    %c0_i32_0 = arith.constant 0 : i32
    %c0_i32_1 = arith.constant 0 : i32
    return %c0_i32, %c0_i32_0 : i32, i32
  }
  func.func @transform_4(%arg0: i32, %arg1: i32) -> (i32, i32) {
    %c0_i32 = arith.constant 0 : i32
    %c0_i32_0 = arith.constant 0 : i32
    %c0_i32_1 = arith.constant 0 : i32
    return %c0_i32, %c0_i32_0 : i32, i32
  }
  func.func @transform_5(%arg0: i32, %arg1: i32) -> (i32, i32) {
    %c0_i32 = arith.constant 0 : i32
    %c0_i32_0 = arith.constant 0 : i32
    %c0_i32_1 = arith.constant 0 : i32
    return %c0_i32, %c0_i32_0 : i32, i32
  }
  func.func @transform_6(%arg0: i32, %arg1: i32) -> (i32, i32) {
    %c0_i32 = arith.constant 0 : i32
    %c0_i32_0 = arith.constant 0 : i32
    %c0_i32_1 = arith.constant 0 : i32
    return %c0_i32, %c0_i32_0 : i32, i32
  }
  func.func @transform_7(%arg0: i32, %arg1: i32) -> (i32, i32, i32, i32) {
    %c0_i32 = arith.constant 0 : i32
    %c0_i32_0 = arith.constant 0 : i32
    %c0_i32_1 = arith.constant 0 : i32
    return %arg0, %arg1, %c0_i32, %c0_i32_0 : i32, i32, i32, i32
  }
}

</mosaic_0001>

<llo_original>
// kernel: _lambda_.1
$region0: #{_lambda_.1}
  #allocation0 [shape = 'u32[]', space=smem, size = 0x4, offset = 0x4, fixed_abs, tag = 'smem constant byte address 0x4 - core index']
  #allocation1 [shape = 'u32[144,128]{1,0:T(1,128)}', space=vmem, size = 0x12000, scoped, tag = 'internal scratch']
  #allocation2 [shape = 'f32[2,16,64]{2,1,0:T(8,128)}', space=vmem, size = 0x4000, scoped, tag = 'scratch operand']
  %s0 = inlined_call_operand.hbm [shape: f32[2,16,16,32], index: 0, kind: input, shape index: {}]
  %s1 = inlined_call_operand.vmem [shape: f32[32,128], index: 1, kind: input, shape index: {}]
  %s2 = inlined_call_operand.vmem [shape: f32[1,128], index: 2, kind: input, shape index: {}]
  %s3 = inlined_call_operand.vmem [shape: f32[9,64], index: 3, kind: input, shape index: {}]
  %s4 = inlined_call_operand.vmem [shape: f32[1,64], index: 4, kind: input, shape index: {}]
  %s5 = inlined_call_operand.vmem [shape: f32[64,64], index: 5, kind: input, shape index: {}]
  %s6 = inlined_call_operand.vmem [shape: f32[1,64], index: 6, kind: input, shape index: {}]
  %s7 = inlined_call_operand.hbm [shape: f32[2,16,16,64], index: 7, kind: output, shape index: {}]
  %s8 = sld [smem:[#allocation0]]
  $region69: #{_lambda_.1} parent=0
    _
  %s10 = ssub.s32 1, %s8
  %s11 = scalar_select 0, %s10, %s8
  $region1: #{_lambda_.1} parent=0
    #allocation3 [shape = 'u8[262144]{0}', space=vmem, size = 0x40000, scoped, tag = 'input window, operand 0']
    #allocation4 [shape = 's32[2]{0}', space=sflag, size = 0x8, scoped, tag = 'scoped memory for _lambda_.1']
    #allocation5 [shape = 's32[2]{0}', space=sflag, size = 0x8, scoped, tag = 'scoped memory for _lambda_.1']
    #allocation6 [shape = 'u8[262144]{0}', space=vmem, size = 0x40000, scoped, tag = 'output window, operand 0']
    %12 = vsyncpa [#allocation4], 0
    %s13 = scalar_lea.sflag [#allocation4], 1
    %14 = vsyncpa %s13, 0
    %15 = vsyncpa [#allocation5], 0
    %s16 = scalar_lea.sflag [#allocation5], 1
    %17 = vsyncpa %s16, 0
    loop: start=0, step=1, limit=4
    $region2: #{_lambda_.1} parent=1 // loop_pre_header
      _
    $region3: #{_lambda_.1} parent=1 // loop_header
      %s19 = sphi 0, %s23
      %p20 = scmp.ge.s32.totalorder %s19, 4
      %s26 = sphi 0, %s38
      %s27 = sphi 0, %s34
      %s28 = sphi 0, %s26
      %s29 = sphi 0, %s27
      %s30 = sphi 0, %s28
      %s31 = sphi 0, %s29
      %s43 = sphi 0, %s45
      %s46 = sphi 0, %s43
      %s47 = sphi 0, %s46
      %s63 = sphi 0, %s47
      %s67 = sphi 0, %s67
      %s69 = sphi 0, %s67
      %s70 = sphi 0, %s69
      %s84 = sphi 0, %s70
      %s88 = sphi 0, %s88
      %s90 = sphi 0, %s88
      %s91 = sphi 0, %s90
      %s105 = sphi 0, %s91
      %s109 = sphi 0, %s109
      %s111 = sphi 0, %s109
      %s112 = sphi 0, %s111
      %s126 = sphi 0, %s112
      %s130 = sphi 0, %s130
      %s132 = sphi 0, %s130
      %s133 = sphi 0, %s132
      %s147 = sphi 0, %s133
      %s151 = sphi 0, %s151
      %s153 = sphi 0, %s151
      %s154 = sphi 0, %s153
      %s168 = sphi 0, %s154
      %s172 = sphi 0, %s172
      %s174 = sphi 0, %s172
      %s175 = sphi 0, %s174
      %s189 = sphi 0, %s175
      %s197 = sphi 0, %s199
      %s200 = sphi 0, %s197
      %s201 = sphi 0, %s200
      %s217 = sphi 0, %s201
    $region4: #{_lambda_.1} parent=1 // loop_header_branch
      %22 = sbr.rel (%p20) target = $region8
    $region5: #{_lambda_.1} parent=1 // loop_body
      %s24 = ssub.s32 %s19, 1
      %s25 = ssub.s32 %s19, 2
      %s32 = sadd.s32 1, %s27
      %p33 = scmp.ge.s32.totalorder %s32, 1
      %s34 = scalar_select %p33, 0, %s32
      %s35 = sadd.s32 1, %s26
      %s36 = scalar_select %p33, %s35, %s26
      %p37 = scmp.ge.s32.totalorder %s36, 2
      %s38 = scalar_select %p37, 0, %s36
      %s39 = ssub.s32 %s26, %s38
      %s40 = ssub.s32 %s27, %s34
      %s41 = sor.u32 %s39, %s40
      %p42 = scmp.eq.s32.totalorder %s41, 0
      %s44 = sadd.s32 %s43, 1
      %s45 = scalar_select %p42, %s43, %s44
      %p48 = pneg %p42
      %p49 = scmp.eq.s32.totalorder %s19, 1
      %p50 = por %p48, %p49
      %p51 = scmp.ne.s32.totalorder %s43, %s46
      %p52 = scmp.eq.s32.totalorder %s19, 0
      %p53 = por %p51, %p52
      %p54 = scmp.ne.s32.totalorder %s43, %s46
      %p55 = scmp.eq.s32.totalorder %s24, 1
      %p56 = por %p54, %p55
      %p57 = scmp.ne.s32.totalorder %s46, %s47
      %p58 = scmp.eq.s32.totalorder %s24, 0
      %p59 = por %p57, %p58
      %p60 = scmp.ne.s32.totalorder %s46, %s47
      %p61 = scmp.eq.s32.totalorder %s25, 1
      %p62 = por %p60, %p61
      %p64 = scmp.ne.s32.totalorder %s47, %s63
      %p65 = scmp.eq.s32.totalorder %s25, 0
      %p66 = por %p64, %p65
      %s68 = sadd.s32 %s67, 1
      %p71 = scmp.eq.s32.totalorder %s19, 1
      %p72 = scmp.ne.s32.totalorder %s67, %s69
      %p73 = scmp.eq.s32.totalorder %s19, 0
      %p74 = por %p72, %p73
      %p75 = scmp.ne.s32.totalorder %s67, %s69
      %p76 = scmp.eq.s32.totalorder %s24, 1
      %p77 = por %p75, %p76
      %p78 = scmp.ne.s32.totalorder %s69, %s70
      %p79 = scmp.eq.s32.totalorder %s24, 0
      %p80 = por %p78, %p79
      %p81 = scmp.ne.s32.totalorder %s69, %s70
      %p82 = scmp.eq.s32.totalorder %s25, 1
      %p83 = por %p81, %p82
      %p85 = scmp.ne.s32.totalorder %s70, %s84
      %p86 = scmp.eq.s32.totalorder %s25, 0
      %p87 = por %p85, %p86
      %s89 = sadd.s32 %s88, 1
      %p92 = scmp.eq.s32.totalorder %s19, 1
      %p93 = scmp.ne.s32.totalorder %s88, %s90
      %p94 = scmp.eq.s32.totalorder %s19, 0
      %p95 = por %p93, %p94
      %p96 = scmp.ne.s32.totalorder %s88, %s90
      %p97 = scmp.eq.s32.totalorder %s24, 1
      %p98 = por %p96, %p97
      %p99 = scmp.ne.s32.totalorder %s90, %s91
      %p100 = scmp.eq.s32.totalorder %s24, 0
      %p101 = por %p99, %p100
      %p102 = scmp.ne.s32.totalorder %s90, %s91
      %p103 = scmp.eq.s32.totalorder %s25, 1
      %p104 = por %p102, %p103
      %p106 = scmp.ne.s32.totalorder %s91, %s105
      %p107 = scmp.eq.s32.totalorder %s25, 0
      %p108 = por %p106, %p107
      %s110 = sadd.s32 %s109, 1
      %p113 = scmp.eq.s32.totalorder %s19, 1
      %p114 = scmp.ne.s32.totalorder %s109, %s111
      %p115 = scmp.eq.s32.totalorder %s19, 0
      %p116 = por %p114, %p115
      %p117 = scmp.ne.s32.totalorder %s109, %s111
      %p118 = scmp.eq.s32.totalorder %s24, 1
      %p119 = por %p117, %p118
      %p120 = scmp.ne.s32.totalorder %s111, %s112
      %p121 = scmp.eq.s32.totalorder %s24, 0
      %p122 = por %p120, %p121
      %p123 = scmp.ne.s32.totalorder %s111, %s112
      %p124 = scmp.eq.s32.totalorder %s25, 1
      %p125 = por %p123, %p124
      %p127 = scmp.ne.s32.totalorder %s112, %s126
      %p128 = scmp.eq.s32.totalorder %s25, 0
      %p129 = por %p127, %p128
      %s131 = sadd.s32 %s130, 1
      %p134 = scmp.eq.s32.totalorder %s19, 1
      %p135 = scmp.ne.s32.totalorder %s130, %s132
      %p136 = scmp.eq.s32.totalorder %s19, 0
      %p137 = por %p135, %p136
      %p138 = scmp.ne.s32.totalorder %s130, %s132
      %p139 = scmp.eq.s32.totalorder %s24, 1
      %p140 = por %p138, %p139
      %p141 = scmp.ne.s32.totalorder %s132, %s133
      %p142 = scmp.eq.s32.totalorder %s24, 0
      %p143 = por %p141, %p142
      %p144 = scmp.ne.s32.totalorder %s132, %s133
      %p145 = scmp.eq.s32.totalorder %s25, 1
      %p146 = por %p144, %p145
      %p148 = scmp.ne.s32.totalorder %s133, %s147
      %p149 = scmp.eq.s32.totalorder %s25, 0
      %p150 = por %p148, %p149
      %s152 = sadd.s32 %s151, 1
      %p155 = scmp.eq.s32.totalorder %s19, 1
      %p156 = scmp.ne.s32.totalorder %s151, %s153
      %p157 = scmp.eq.s32.totalorder %s19, 0
      %p158 = por %p156, %p157
      %p159 = scmp.ne.s32.totalorder %s151, %s153
      %p160 = scmp.eq.s32.totalorder %s24, 1
      %p161 = por %p159, %p160
      %p162 = scmp.ne.s32.totalorder %s153, %s154
      %p163 = scmp.eq.s32.totalorder %s24, 0
      %p164 = por %p162, %p163
      %p165 = scmp.ne.s32.totalorder %s153, %s154
      %p166 = scmp.eq.s32.totalorder %s25, 1
      %p167 = por %p165, %p166
      %p169 = scmp.ne.s32.totalorder %s154, %s168
      %p170 = scmp.eq.s32.totalorder %s25, 0
      %p171 = por %p169, %p170
      %s173 = sadd.s32 %s172, 1
      %p176 = scmp.eq.s32.totalorder %s19, 1
      %p177 = scmp.ne.s32.totalorder %s172, %s174
      %p178 = scmp.eq.s32.totalorder %s19, 0
      %p179 = por %p177, %p178
      %p180 = scmp.ne.s32.totalorder %s172, %s174
      %p181 = scmp.eq.s32.totalorder %s24, 1
      %p182 = por %p180, %p181
      %p183 = scmp.ne.s32.totalorder %s174, %s175
      %p184 = scmp.eq.s32.totalorder %s24, 0
      %p185 = por %p183, %p184
      %p186 = scmp.ne.s32.totalorder %s174, %s175
      %p187 = scmp.eq.s32.totalorder %s25, 1
      %p188 = por %p186, %p187
      %p190 = scmp.ne.s32.totalorder %s175, %s189
      %p191 = scmp.eq.s32.totalorder %s25, 0
      %p192 = por %p190, %p191
      %s193 = ssub.s32 %s26, %s38
      %s194 = ssub.s32 %s27, %s34
      %s195 = sor.u32 %s193, %s194
      %p196 = scmp.eq.s32.totalorder %s195, 0
      %s198 = sadd.s32 %s197, 1
      %s199 = scalar_select %p196, %s197, %s198
      %p202 = pneg %p196
      %p203 = scmp.eq.s32.totalorder %s19, 1
      %p204 = por %p202, %p203
      %p205 = scmp.ne.s32.totalorder %s197, %s200
      %p206 = scmp.eq.s32.totalorder %s19, 0
      %p207 = por %p205, %p206
      %p208 = scmp.ne.s32.totalorder %s197, %s200
      %p209 = scmp.eq.s32.totalorder %s24, 1
      %p210 = por %p208, %p209
      %p211 = scmp.ne.s32.totalorder %s200, %s201
      %p212 = scmp.eq.s32.totalorder %s24, 0
      %p213 = por %p211, %p212
      %p214 = scmp.ne.s32.totalorder %s200, %s201
      %p215 = scmp.eq.s32.totalorder %s25, 1
      %p216 = por %p214, %p215
      %p218 = scmp.ne.s32.totalorder %s201, %s217
      %p219 = scmp.eq.s32.totalorder %s25, 0
      %p220 = por %p218, %p219
      %p221 = scmp.le.s32.totalorder 1, %s19
      %p222 = scmp.lt.s32.totalorder %s19, 3
      %p223 = pnand %p221, %p222
      %p224 = pneg %p223
      // Predicated region
      $region9: #{_lambda_.1} parent=5 // pred_check
        _
      $region10: #{_lambda_.1} parent=5 // pred_check_branch
        %226 = sbr.rel (%p223) target = $region12
      $region11: #{_lambda_.1} parent=5 // pred_region
        %s227 = ssub.s32 %s19, 1
        // Predicated region
        $region13: #{_lambda_.1} parent=11 // pred_check
          %p228 = pneg %p80
        $region14: #{_lambda_.1} parent=11 // pred_check_branch
          %230 = sbr.rel (%p228) target = $region16
        $region15: #{_lambda_.1} parent=11 // pred_region
          _
        $region16: #{_lambda_.1} parent=11 // pred_fallthru
          _
        // Predicated region
        $region17: #{_lambda_.1} parent=11 // pred_check
          %p231 = pneg %p101
        $region18: #{_lambda_.1} parent=11 // pred_check_branch
          %233 = sbr.rel (%p231) target = $region20
        $region19: #{_lambda_.1} parent=11 // pred_region
          _
        $region20: #{_lambda_.1} parent=11 // pred_fallthru
          _
        // Predicated region
        $region21: #{_lambda_.1} parent=11 // pred_check
          %p234 = pneg %p122
        $region22: #{_lambda_.1} parent=11 // pred_check_branch
          %236 = sbr.rel (%p234) target = $region24
        $region23: #{_lambda_.1} parent=11 // pred_region
          _
        $region24: #{_lambda_.1} parent=11 // pred_fallthru
          _
        // Predicated region
        $region25: #{_lambda_.1} parent=11 // pred_check
          %p237 = pneg %p143
        $region26: #{_lambda_.1} parent=11 // pred_check_branch
          %239 = sbr.rel (%p237) target = $region28
        $region27: #{_lambda_.1} parent=11 // pred_region
          _
        $region28: #{_lambda_.1} parent=11 // pred_fallthru
          _
        // Predicated region
        $region29: #{_lambda_.1} parent=11 // pred_check
          %p240 = pneg %p164
        $region30: #{_lambda_.1} parent=11 // pred_check_branch
          %242 = sbr.rel (%p240) target = $region32
        $region31: #{_lambda_.1} parent=11 // pred_region
          _
        $region32: #{_lambda_.1} parent=11 // pred_fallthru
          _
        // Predicated region
        $region33: #{_lambda_.1} parent=11 // pred_check
          %p243 = pneg %p185
        $region34: #{_lambda_.1} parent=11 // pred_check_branch
          %245 = sbr.rel (%p243) target = $region36
        $region35: #{_lambda_.1} parent=11 // pred_region
          _
        $region36: #{_lambda_.1} parent=11 // pred_fallthru
          _
      $region12: #{_lambda_.1} parent=5 // pred_fallthru
        _
      %p246 = scmp.lt.s32.totalorder %s19, 2
      // Predicated region
      $region37: #{_lambda_.1} parent=5 // pred_check
        %p247 = pneg %p246
      $region38: #{_lambda_.1} parent=5 // pred_check_branch
        %249 = sbr.rel (%p247) target = $region40
      $region39: #{_lambda_.1} parent=5 // pred_region
        // Predicated region
        $region41: #{_lambda_.1} parent=39 // pred_check
          %p250 = pneg %p53
        $region42: #{_lambda_.1} parent=39 // pred_check_branch
          %252 = sbr.rel (%p250) target = $region44
        $region43: #{_lambda_.1} parent=39 // pred_region
          %s253 = sand.u32 %s43, 1
          %s254 = scalar_lea.sflag [#allocation4], %s253
          %s255 = sand.u32 %s43, 1
          %s256 = smul.addr %s255, 256
          %s257 = scalar_lea.vmem [#allocation3], %s256
          %s258 = smul.u32 16, %s27
          %s260 = ssub.s32 4096, 4096
          %261 = vsyncadd %s254, %s260
          %s262 = smul.addr %s258, 2
          %s263 = smul.addr %s26, 32
          %s264 = sadd.s32 %s262, %s263
          %s265 = smul.addr %s264, 128
          %s266 = scalar_lea.hbm %s0, %s265
          %s267 = sshll.u32 %s257, 4
          %s268 = int_to_ptr.vmem [resolvable:$true] %s267
          %273 = dma.hbm_to_vmem [thread:$0]  %s266, 4096, %s268, %s254, 128, 128, 8
        $region44: #{_lambda_.1} parent=39 // pred_fallthru
          _
      $region40: #{_lambda_.1} parent=5 // pred_fallthru
        _
      %p274 = scmp.le.s32.totalorder 1, %s19
      %p275 = scmp.lt.s32.totalorder %s19, 3
      %p276 = pnand %p274, %p275
      %p277 = pneg %p276
      // Predicated region
      $region45: #{_lambda_.1} parent=5 // pred_check
        _
      $region46: #{_lambda_.1} parent=5 // pred_check_branch
        %279 = sbr.rel (%p276) target = $region48
      $region47: #{_lambda_.1} parent=5 // pred_region
        %s280 = ssub.s32 %s19, 1
        %s281 = sand.u32 %s46, 1
        %s282 = scalar_lea.sflag [#allocation4], %s281
        %s283 = sand.u32 %s46, 1
        %s284 = smul.addr %s283, 256
        %s285 = scalar_lea.vmem [#allocation3], %s284
        // Predicated region
        $region49: #{_lambda_.1} parent=47 // pred_check
          %p286 = pneg %p59
        $region50: #{_lambda_.1} parent=47 // pred_check_branch
          %288 = sbr.rel (%p286) target = $region52
        $region51: #{_lambda_.1} parent=47 // pred_region
          %289 = dma.done %s282, 4096
        $region52: #{_lambda_.1} parent=47 // pred_fallthru
          _
        %s290 = sand.u32 %s46, 1
        %s291 = scalar_lea.sflag [#allocation4], %s290
        %s292 = sand.u32 %s46, 1
        %s293 = smul.addr %s292, 256
        %s294 = scalar_lea.vmem [#allocation3], %s293
        %p295 = pneg %p59
        %p296 = pneg %p56
        %p297 = pneg %p80
        %p298 = pneg %p77
        %p299 = pneg %p101
        %p300 = pneg %p98
        %p301 = pneg %p122
        %p302 = pneg %p119
        %p303 = pneg %p143
        %p304 = pneg %p140
        %p305 = pneg %p164
        %p306 = pneg %p161
        %p307 = pneg %p185
        %p308 = pneg %p182
        %p309 = pneg %p213
        %p310 = pneg %p210
        %s311 = sand.u32 %s200, 1
        %s312 = scalar_lea.sflag [#allocation5], %s311
        %s313 = sand.u32 %s200, 1
        %s314 = smul.addr %s313, 256
        %s315 = scalar_lea.vmem [#allocation6], %s314
        %s316 = smul.u32 16, %s29
        %s317 = smul.u32 16, %s29
        %v318 = vld [vmem:[%s285] sm:$0xff]
        %v319 = vld [vmem:[%s285 + $0x8] sm:$0xff]
        %v320 = vld [vmem:[%s285 + $0x10] sm:$0xff]
        %v321 = vld [vmem:[%s285 + $0x18] sm:$0xff]
        %v322 = vld [vmem:[%s285 + $0x20] sm:$0xff]
        %v323 = vld [vmem:[%s285 + $0x28] sm:$0xff]
        %v324 = vld [vmem:[%s285 + $0x30] sm:$0xff]
        %v325 = vld [vmem:[%s285 + $0x38] sm:$0xff]
        %v326 = vld [vmem:[%s285 + $0x40] sm:$0xff]
        %v327 = vld [vmem:[%s285 + $0x48] sm:$0xff]
        %v328 = vld [vmem:[%s285 + $0x50] sm:$0xff]
        %v329 = vld [vmem:[%s285 + $0x58] sm:$0xff]
        %v330 = vld [vmem:[%s285 + $0x60] sm:$0xff]
        %v331 = vld [vmem:[%s285 + $0x68] sm:$0xff]
        %v332 = vld [vmem:[%s285 + $0x70] sm:$0xff]
        %v333 = vld [vmem:[%s285 + $0x78] sm:$0xff]
        %v334 = vld [vmem:[%s285 + $0x80] sm:$0xff]
        %v335 = vld [vmem:[%s285 + $0x88] sm:$0xff]
        %v336 = vld [vmem:[%s285 + $0x90] sm:$0xff]
        %v337 = vld [vmem:[%s285 + $0x98] sm:$0xff]
        %v338 = vld [vmem:[%s285 + $0xa0] sm:$0xff]
        %v339 = vld [vmem:[%s285 + $0xa8] sm:$0xff]
        %v340 = vld [vmem:[%s285 + $0xb0] sm:$0xff]
        %v341 = vld [vmem:[%s285 + $0xb8] sm:$0xff]
        %v342 = vld [vmem:[%s285 + $0xc0] sm:$0xff]
        %v343 = vld [vmem:[%s285 + $0xc8] sm:$0xff]
        %v344 = vld [vmem:[%s285 + $0xd0] sm:$0xff]
        %v345 = vld [vmem:[%s285 + $0xd8] sm:$0xff]
        %v346 = vld [vmem:[%s285 + $0xe0] sm:$0xff]
        %v347 = vld [vmem:[%s285 + $0xe8] sm:$0xff]
        %v348 = vld [vmem:[%s285 + $0xf0] sm:$0xff]
        %v349 = vld [vmem:[%s285 + $0xf8] sm:$0xff]
        %v350 = vld [vmem:[%s1] sm:$0xff]
        %v351 = vld [vmem:[%s1 + $0x8] sm:$0xff]
        %v352 = vld [vmem:[%s1 + $0x10] sm:$0xff]
        %v353 = vld [vmem:[%s1 + $0x18] sm:$0xff]
        %v354 = vld [vmem:[%s2] sm:$0x1]
        %v356 = vlaneseq
        %v357 = vshrl.u32 %v356, 7
        %v358 = vsub.s32 0, %v357
        %v359 = vrot.slane %v354, %v358
        %vm361 = vcmask 261120
        %v363 = vsel %vm361, %v318, 0
        %v366 = vsel %vm361, %v319, 0
        %v369 = vsel %vm361, %v320, 0
        %v372 = vsel %vm361, %v321, 0
        %v375 = vsel %vm361, %v322, 0
        %v378 = vsel %vm361, %v323, 0
        %v381 = vsel %vm361, %v324, 0
        %v384 = vsel %vm361, %v325, 0
        %v387 = vsel %vm361, %v326, 0
        %v390 = vsel %vm361, %v327, 0
        %v393 = vsel %vm361, %v328, 0
        %v396 = vsel %vm361, %v329, 0
        %v399 = vsel %vm361, %v330, 0
        %v402 = vsel %vm361, %v331, 0
        %v405 = vsel %vm361, %v332, 0
        %v408 = vsel %vm361, %v333, 0
        %v411 = vsel %vm361, %v334, 0
        %v414 = vsel %vm361, %v335, 0
        %v417 = vsel %vm361, %v336, 0
        %v420 = vsel %vm361, %v337, 0
        %v423 = vsel %vm361, %v338, 0
        %v426 = vsel %vm361, %v339, 0
        %v429 = vsel %vm361, %v340, 0
        %v432 = vsel %vm361, %v341, 0
        %v435 = vsel %vm361, %v342, 0
        %v438 = vsel %vm361, %v343, 0
        %v441 = vsel %vm361, %v344, 0
        %v444 = vsel %vm361, %v345, 0
        %v447 = vsel %vm361, %v346, 0
        %v450 = vsel %vm361, %v347, 0
        %v453 = vsel %vm361, %v348, 0
        %v456 = vsel %vm361, %v349, 0
        %458 = vmatprep.subr.mxu0 0.0
        %459 = vmatpush1.msra.mxu0 %v350
        %460 = vmatprep.subr.mxu0 0.0
        %461 = vmatpush1.msra.mxu0 %v351
        %462 = vmatprep.subr.mxu0 0.0
        %463 = vmatpush1.msra.mxu0 %v352
        %464 = vmatprep.subr.mxu0 0.0
        %465 = vmatpush1.msra.mxu0 %v353
        %466 = vmatprep.subr.mxu0 0.0
        %467 = vmatpush1.msra.mxu0 0.0
        %468 = vmatprep.subr.mxu0 0.0
        %469 = vmatpush1.msra.mxu0 0.0
        %470 = vmatprep.subr.mxu0 0.0
        %471 = vmatpush1.msra.mxu0 0.0
        %472 = vmatprep.subr.mxu0 0.0
        %473 = vmatpush1.msra.mxu0 0.0
        %474 = vmatprep.subr.mxu0 0.0
        %475 = vmatpush1.msra.mxu0 0.0
        %476 = vmatprep.subr.mxu0 0.0
        %477 = vmatpush1.msra.mxu0 0.0
        %478 = vmatprep.subr.mxu0 0.0
        %479 = vmatpush1.msra.mxu0 0.0
        %480 = vmatprep.subr.mxu0 0.0
        %481 = vmatpush1.msra.mxu0 0.0
        %482 = vmatprep.subr.mxu0 0.0
        %483 = vmatpush1.msra.mxu0 0.0
        %484 = vmatprep.subr.mxu0 0.0
        %485 = vmatpush1.msra.mxu0 0.0
        %486 = vmatprep.subr.mxu0 0.0
        %487 = vmatpush1.msra.mxu0 0.0
        %488 = vmatprep.subr.mxu0 0.0
        %489 = vmatpush1.msra.mxu0 0.0
        %490 = vmatprep.subr.mxu0 0.0
        %491 = vmatpush1.msra.mxu0 0.0
        %492 = vmatprep.subr.mxu0 0.0
        %493 = vmatpush1.msra.mxu0 0.0
        %494 = vmatprep.subr.mxu0 0.0
        %495 = vmatpush1.msra.mxu0 0.0
        %496 = vmatprep.subr.mxu0 0.0
        %497 = vmatpush1.msra.mxu0 0.0
        %498 = vmatprep.subr.mxu0 0.0
        %499 = vmatpush1.msra.mxu0 0.0
        %500 = vmatprep.subr.mxu0 0.0
        %501 = vmatpush1.msra.mxu0 0.0
        %502 = vmatprep.subr.mxu0 0.0
        %503 = vmatpush1.msra.mxu0 0.0
        %504 = vmatprep.subr.mxu0 0.0
        %505 = vmatpush1.msra.mxu0 0.0
        %506 = vmatprep.subr.mxu0 0.0
        %507 = vmatpush1.msra.mxu0 0.0
        %508 = vmatprep.subr.mxu0 0.0
        %509 = vmatpush1.msra.mxu0 0.0
        %510 = vmatprep.subr.mxu0 0.0
        %511 = vmatpush1.msra.mxu0 0.0
        %512 = vmatprep.subr.mxu0 0.0
        %513 = vmatpush1.msra.mxu0 0.0
        %514 = vmatprep.subr.mxu0 0.0
        %515 = vmatpush1.msra.mxu0 0.0
        %516 = vmatprep.subr.mxu0 0.0
        %517 = vmatpush1.msra.mxu0 0.0
        %518 = vmatprep.subr.mxu0 0.0
        %519 = vmatpush1.msra.mxu0 0.0
        %520 = vmatprep.subr.mxu0 0.0
        %521 = vmatpush1.msra.mxu0 0.0
        %522 = vmatprep.mubr.f32.mxu0 0.0
        %523 = vmatmul.mubr.f32.gmra.mrb[0].mxu0 %v363
        %v524 = vpop.f32.mrb[0].mxu0
        %v525 = vadd.f32 %v359, %v524
        %v526 = vpop.f32.mrb[0].mxu0
        %527 = vmatprep.mubr.f32.mxu0 0.0
        %528 = vmatmul.mubr.f32.gmra.mrb[0].mxu0 %v366
        %v529 = vpop.f32.mrb[0].mxu0
        %v530 = vadd.f32 %v359, %v529
        %v531 = vpop.f32.mrb[0].mxu0
        %532 = vmatprep.mubr.f32.mxu0 0.0
        %533 = vmatmul.mubr.f32.gmra.mrb[0].mxu0 %v369
        %v534 = vpop.f32.mrb[0].mxu0
        %v535 = vadd.f32 %v359, %v534
        %v536 = vpop.f32.mrb[0].mxu0
        %537 = vmatprep.mubr.f32.mxu0 0.0
        %538 = vmatmul.mubr.f32.gmra.mrb[0].mxu0 %v372
        %v539 = vpop.f32.mrb[0].mxu0
        %v540 = vadd.f32 %v359, %v539
        %v541 = vpop.f32.mrb[0].mxu0
        %542 = vmatprep.mubr.f32.mxu0 0.0
        %543 = vmatmul.mubr.f32.gmra.mrb[0].mxu0 %v375
        %v544 = vpop.f32.mrb[0].mxu0
        %v545 = vadd.f32 %v359, %v544
        %v546 = vpop.f32.mrb[0].mxu0
        %547 = vmatprep.mubr.f32.mxu0 0.0
        %548 = vmatmul.mubr.f32.gmra.mrb[0].mxu0 %v378
        %v549 = vpop.f32.mrb[0].mxu0
        %v550 = vadd.f32 %v359, %v549
        %v551 = vpop.f32.mrb[0].mxu0
        %552 = vmatprep.mubr.f32.mxu0 0.0
        %553 = vmatmul.mubr.f32.gmra.mrb[0].mxu0 %v381
        %v554 = vpop.f32.mrb[0].mxu0
        %v555 = vadd.f32 %v359, %v554
        %v556 = vpop.f32.mrb[0].mxu0
        %557 = vmatprep.mubr.f32.mxu0 0.0
        %558 = vmatmul.mubr.f32.gmra.mrb[0].mxu0 %v384
        %v559 = vpop.f32.mrb[0].mxu0
        %v560 = vadd.f32 %v359, %v559
        %v561 = vpop.f32.mrb[0].mxu0
        %562 = vmatprep.mubr.f32.mxu0 0.0
        %563 = vmatmul.mubr.f32.gmra.mrb[0].mxu0 %v387
        %v564 = vpop.f32.mrb[0].mxu0
        %v565 = vadd.f32 %v359, %v564
        %v566 = vpop.f32.mrb[0].mxu0
        %567 = vmatprep.mubr.f32.mxu0 0.0
        %568 = vmatmul.mubr.f32.gmra.mrb[0].mxu0 %v390
        %v569 = vpop.f32.mrb[0].mxu0
        %v570 = vadd.f32 %v359, %v569
        %v571 = vpop.f32.mrb[0].mxu0
        %572 = vmatprep.mubr.f32.mxu0 0.0
        %573 = vmatmul.mubr.f32.gmra.mrb[0].mxu0 %v393
        %v574 = vpop.f32.mrb[0].mxu0
        %v575 = vadd.f32 %v359, %v574
        %v576 = vpop.f32.mrb[0].mxu0
        %577 = vmatprep.mubr.f32.mxu0 0.0
        %578 = vmatmul.mubr.f32.gmra.mrb[0].mxu0 %v396
        %v579 = vpop.f32.mrb[0].mxu0
        %v580 = vadd.f32 %v359, %v579
        %v581 = vpop.f32.mrb[0].mxu0
        %582 = vmatprep.mubr.f32.mxu0 0.0
        %583 = vmatmul.mubr.f32.gmra.mrb[0].mxu0 %v399
        %v584 = vpop.f32.mrb[0].mxu0
        %v585 = vadd.f32 %v359, %v584
        %v586 = vpop.f32.mrb[0].mxu0
        %587 = vmatprep.mubr.f32.mxu0 0.0
        %588 = vmatmul.mubr.f32.gmra.mrb[0].mxu0 %v402
        %v589 = vpop.f32.mrb[0].mxu0
        %v590 = vadd.f32 %v359, %v589
        %v591 = vpop.f32.mrb[0].mxu0
        %592 = vmatprep.mubr.f32.mxu0 0.0
        %593 = vmatmul.mubr.f32.gmra.mrb[0].mxu0 %v405
        %v594 = vpop.f32.mrb[0].mxu0
        %v595 = vadd.f32 %v359, %v594
        %v596 = vpop.f32.mrb[0].mxu0
        %597 = vmatprep.mubr.f32.mxu0 0.0
        %598 = vmatmul.mubr.f32.gmra.mrb[0].mxu0 %v408
        %v599 = vpop.f32.mrb[0].mxu0
        %v600 = vadd.f32 %v359, %v599
        %v601 = vpop.f32.mrb[0].mxu0
        %602 = vmatprep.mubr.f32.mxu0 0.0
        %603 = vmatmul.mubr.f32.gmra.mrb[0].mxu0 %v411
        %v604 = vpop.f32.mrb[0].mxu0
        %v605 = vadd.f32 %v359, %v604
        %v606 = vpop.f32.mrb[0].mxu0
        %607 = vmatprep.mubr.f32.mxu0 0.0
        %608 = vmatmul.mubr.f32.gmra.mrb[0].mxu0 %v414
        %v609 = vpop.f32.mrb[0].mxu0
        %v610 = vadd.f32 %v359, %v609
        %v611 = vpop.f32.mrb[0].mxu0
        %612 = vmatprep.mubr.f32.mxu0 0.0
        %613 = vmatmul.mubr.f32.gmra.mrb[0].mxu0 %v417
        %v614 = vpop.f32.mrb[0].mxu0
        %v615 = vadd.f32 %v359, %v614
        %v616 = vpop.f32.mrb[0].mxu0
        %617 = vmatprep.mubr.f32.mxu0 0.0
        %618 = vmatmul.mubr.f32.gmra.mrb[0].mxu0 %v420
        %v619 = vpop.f32.mrb[0].mxu0
        %v620 = vadd.f32 %v359, %v619
        %v621 = vpop.f32.mrb[0].mxu0
        %622 = vmatprep.mubr.f32.mxu0 0.0
        %623 = vmatmul.mubr.f32.gmra.mrb[0].mxu0 %v423
        %v624 = vpop.f32.mrb[0].mxu0
        %v625 = vadd.f32 %v359, %v624
        %v626 = vpop.f32.mrb[0].mxu0
        %627 = vmatprep.mubr.f32.mxu0 0.0
        %628 = vmatmul.mubr.f32.gmra.mrb[0].mxu0 %v426
        %v629 = vpop.f32.mrb[0].mxu0
        %v630 = vadd.f32 %v359, %v629
        %v631 = vpop.f32.mrb[0].mxu0
        %632 = vmatprep.mubr.f32.mxu0 0.0
        %633 = vmatmul.mubr.f32.gmra.mrb[0].mxu0 %v429
        %v634 = vpop.f32.mrb[0].mxu0
        %v635 = vadd.f32 %v359, %v634
        %v636 = vpop.f32.mrb[0].mxu0
        %637 = vmatprep.mubr.f32.mxu0 0.0
        %638 = vmatmul.mubr.f32.gmra.mrb[0].mxu0 %v432
        %v639 = vpop.f32.mrb[0].mxu0
        %v640 = vadd.f32 %v359, %v639
        %v641 = vpop.f32.mrb[0].mxu0
        %642 = vmatprep.mubr.f32.mxu0 0.0
        %643 = vmatmul.mubr.f32.gmra.mrb[0].mxu0 %v435
        %v644 = vpop.f32.mrb[0].mxu0
        %v645 = vadd.f32 %v359, %v644
        %v646 = vpop.f32.mrb[0].mxu0
        %647 = vmatprep.mubr.f32.mxu0 0.0
        %648 = vmatmul.mubr.f32.gmra.mrb[0].mxu0 %v438
        %v649 = vpop.f32.mrb[0].mxu0
        %v650 = vadd.f32 %v359, %v649
        %v651 = vpop.f32.mrb[0].mxu0
        %652 = vmatprep.mubr.f32.mxu0 0.0
        %653 = vmatmul.mubr.f32.gmra.mrb[0].mxu0 %v441
        %v654 = vpop.f32.mrb[0].mxu0
        %v655 = vadd.f32 %v359, %v654
        %v656 = vpop.f32.mrb[0].mxu0
        %657 = vmatprep.mubr.f32.mxu0 0.0
        %658 = vmatmul.mubr.f32.gmra.mrb[0].mxu0 %v444
        %v659 = vpop.f32.mrb[0].mxu0
        %v660 = vadd.f32 %v359, %v659
        %v661 = vpop.f32.mrb[0].mxu0
        %662 = vmatprep.mubr.f32.mxu0 0.0
        %663 = vmatmul.mubr.f32.gmra.mrb[0].mxu0 %v447
        %v664 = vpop.f32.mrb[0].mxu0
        %v665 = vadd.f32 %v359, %v664
        %v666 = vpop.f32.mrb[0].mxu0
        %667 = vmatprep.mubr.f32.mxu0 0.0
        %668 = vmatmul.mubr.f32.gmra.mrb[0].mxu0 %v450
        %v669 = vpop.f32.mrb[0].mxu0
        %v670 = vadd.f32 %v359, %v669
        %v671 = vpop.f32.mrb[0].mxu0
        %672 = vmatprep.mubr.f32.mxu0 0.0
        %673 = vmatmul.mubr.f32.gmra.mrb[0].mxu0 %v453
        %v674 = vpop.f32.mrb[0].mxu0
        %v675 = vadd.f32 %v359, %v674
        %v676 = vpop.f32.mrb[0].mxu0
        %677 = vmatprep.mubr.f32.mxu0 0.0
        %678 = vmatmul.mubr.f32.gmra.mrb[0].mxu0 %v456
        %v679 = vpop.f32.mrb[0].mxu0
        %v680 = vadd.f32 %v359, %v679
        %v681 = vpop.f32.mrb[0].mxu0
        %682 = vdwg.mxu0
        %p683 = scmp.eq.s32.totalorder %s29, 0
        // Predicated region
        $region53: #{_lambda_.1} parent=47 // pred_check
          %p684 = pneg %p683
        $region54: #{_lambda_.1} parent=47 // pred_check_branch
          %686 = sbr.rel (%p684) target = $region56
        $region55: #{_lambda_.1} parent=47 // pred_region
          %vm687 = vcmask 523264
          %688 = vst.msk [vmem:[#allocation2] sm:$0xff] %vm687, 0.0
          %689 = vst.msk [vmem:[#allocation2 + $0x8] sm:$0xff] %vm687, 0.0
          %690 = vst.msk [vmem:[#allocation2 + $0x10] sm:$0xff] %vm687, 0.0
          %691 = vst.msk [vmem:[#allocation2 + $0x18] sm:$0xff] %vm687, 0.0
        $region56: #{_lambda_.1} parent=47 // pred_fallthru
          _
        %v692 = vld [vmem:[#allocation2] sm:$0xff]
        %v693 = vld [vmem:[#allocation2 + $0x8] sm:$0xff]
        %v694 = vld [vmem:[#allocation2 + $0x10] sm:$0xff]
        %v695 = vld [vmem:[#allocation2 + $0x18] sm:$0xff]
        %vm696 = vcmask 523264
        %697 = vst.msk [vmem:[#allocation2] sm:$0xff] %vm696, %v665
        %698 = vst.msk [vmem:[#allocation2 + $0x8] sm:$0xff] %vm696, %v670
        %699 = vst.msk [vmem:[#allocation2 + $0x10] sm:$0xff] %vm696, %v675
        %700 = vst.msk [vmem:[#allocation2 + $0x18] sm:$0xff] %vm696, %v680
        %vm737 = vcmask 1040384
        %v738 = vrot.slane %v692, 7
        %v739 = vrot.slane %v693, 7
        %v740 = vsel %vm737, %v738, %v739
        %v741 = vrot.slane %v694, 7
        %v742 = vrot.slane %v695, 7
        %v743 = vsel %vm737, %v741, %v742
        %v744 = vrot.slane %v525, 7
        %v745 = vrot.slane %v530, 7
        %v746 = vsel %vm737, %v744, %v745
        %v747 = vrot.slane %v535, 7
        %v748 = vrot.slane %v540, 7
        %v749 = vsel %vm737, %v747, %v748
        %v750 = vrot.slane %v545, 7
        %v751 = vrot.slane %v550, 7
        %v752 = vsel %vm737, %v750, %v751
        %v753 = vrot.slane %v555, 7
        %v754 = vrot.slane %v560, 7
        %v755 = vsel %vm737, %v753, %v754
        %v756 = vrot.slane %v565, 7
        %v757 = vrot.slane %v570, 7
        %v758 = vsel %vm737, %v756, %v757
        %v759 = vrot.slane %v575, 7
        %v760 = vrot.slane %v580, 7
        %v761 = vsel %vm737, %v759, %v760
        %v762 = vrot.slane %v585, 7
        %v763 = vrot.slane %v590, 7
        %v764 = vsel %vm737, %v762, %v763
        %v765 = vrot.slane %v595, 7
        %v766 = vrot.slane %v600, 7
        %v767 = vsel %vm737, %v765, %v766
        %v768 = vrot.slane %v605, 7
        %v769 = vrot.slane %v610, 7
        %v770 = vsel %vm737, %v768, %v769
        %v771 = vrot.slane %v615, 7
        %v772 = vrot.slane %v620, 7
        %v773 = vsel %vm737, %v771, %v772
        %v774 = vrot.slane %v625, 7
        %v775 = vrot.slane %v630, 7
        %v776 = vsel %vm737, %v774, %v775
        %v777 = vrot.slane %v635, 7
        %v778 = vrot.slane %v640, 7
        %v779 = vsel %vm737, %v777, %v778
        %v780 = vrot.slane %v645, 7
        %v781 = vrot.slane %v650, 7
        %v782 = vsel %vm737, %v780, %v781
        %v783 = vrot.slane %v655, 7
        %v784 = vrot.slane %v660, 7
        %v785 = vsel %vm737, %v783, %v784
        %v786 = vrot.slane %v665, 7
        %v787 = vrot.slane %v670, 7
        %v788 = vsel %vm737, %v786, %v787
        %v789 = vrot.slane %v675, 7
        %v790 = vrot.slane %v680, 7
        %v791 = vsel %vm737, %v789, %v790
        %v828 = vsel %vm737, 0.0, %v738
        %v829 = vsel %vm737, 0.0, %v741
        %v830 = vsel %vm737, 0.0, %v744
        %v831 = vsel %vm737, 0.0, %v747
        %v832 = vsel %vm737, 0.0, %v750
        %v833 = vsel %vm737, 0.0, %v753
        %v834 = vsel %vm737, 0.0, %v756
        %v835 = vsel %vm737, 0.0, %v759
        %v836 = vsel %vm737, 0.0, %v762
        %v837 = vsel %vm737, 0.0, %v765
        %v838 = vsel %vm737, 0.0, %v768
        %v839 = vsel %vm737, 0.0, %v771
        %v840 = vsel %vm737, 0.0, %v774
        %v841 = vsel %vm737, 0.0, %v777
        %v842 = vsel %vm737, 0.0, %v780
        %v843 = vsel %vm737, 0.0, %v783
        %v844 = vsel %vm737, 0.0, %v786
        %v845 = vsel %vm737, 0.0, %v789
        %vm846 = vcmask 1046528
        %v847 = vrot.slane %v692, 1
        %v848 = vrot.slane %v693, 1
        %v849 = vsel %vm846, %v847, %v848
        %v850 = vrot.slane %v694, 1
        %v851 = vrot.slane %v695, 1
        %v852 = vsel %vm846, %v850, %v851
        %v853 = vrot.slane %v525, 1
        %v854 = vrot.slane %v530, 1
        %v855 = vsel %vm846, %v853, %v854
        %v856 = vrot.slane %v535, 1
        %v857 = vrot.slane %v540, 1
        %v858 = vsel %vm846, %v856, %v857
        %v859 = vrot.slane %v545, 1
        %v860 = vrot.slane %v550, 1
        %v861 = vsel %vm846, %v859, %v860
        %v862 = vrot.slane %v555, 1
        %v863 = vrot.slane %v560, 1
        %v864 = vsel %vm846, %v862, %v863
        %v865 = vrot.slane %v565, 1
        %v866 = vrot.slane %v570, 1
        %v867 = vsel %vm846, %v865, %v866
        %v868 = vrot.slane %v575, 1
        %v869 = vrot.slane %v580, 1
        %v870 = vsel %vm846, %v868, %v869
        %v871 = vrot.slane %v585, 1
        %v872 = vrot.slane %v590, 1
        %v873 = vsel %vm846, %v871, %v872
        %v874 = vrot.slane %v595, 1
        %v875 = vrot.slane %v600, 1
        %v876 = vsel %vm846, %v874, %v875
        %v877 = vrot.slane %v605, 1
        %v878 = vrot.slane %v610, 1
        %v879 = vsel %vm846, %v877, %v878
        %v880 = vrot.slane %v615, 1
        %v881 = vrot.slane %v620, 1
        %v882 = vsel %vm846, %v880, %v881
        %v883 = vrot.slane %v625, 1
        %v884 = vrot.slane %v630, 1
        %v885 = vsel %vm846, %v883, %v884
        %v886 = vrot.slane %v635, 1
        %v887 = vrot.slane %v640, 1
        %v888 = vsel %vm846, %v886, %v887
        %v889 = vrot.slane %v645, 1
        %v890 = vrot.slane %v650, 1
        %v891 = vsel %vm846, %v889, %v890
        %v892 = vrot.slane %v655, 1
        %v893 = vrot.slane %v660, 1
        %v894 = vsel %vm846, %v892, %v893
        %v895 = vrot.slane %v665, 1
        %v896 = vrot.slane %v670, 1
        %v897 = vsel %vm846, %v895, %v896
        %v898 = vrot.slane %v675, 1
        %v899 = vrot.slane %v680, 1
        %v900 = vsel %vm846, %v898, %v899
        %v937 = vsel %vm846, %v848, 0.0
        %v938 = vsel %vm846, %v851, 0.0
        %v939 = vsel %vm846, %v854, 0.0
        %v940 = vsel %vm846, %v857, 0.0
        %v941 = vsel %vm846, %v860, 0.0
        %v942 = vsel %vm846, %v863, 0.0
        %v943 = vsel %vm846, %v866, 0.0
        %v944 = vsel %vm846, %v869, 0.0
        %v945 = vsel %vm846, %v872, 0.0
        %v946 = vsel %vm846, %v875, 0.0
        %v947 = vsel %vm846, %v878, 0.0
        %v948 = vsel %vm846, %v881, 0.0
        %v949 = vsel %vm846, %v884, 0.0
        %v950 = vsel %vm846, %v887, 0.0
        %v951 = vsel %vm846, %v890, 0.0
        %v952 = vsel %vm846, %v893, 0.0
        %v953 = vsel %vm846, %v896, 0.0
        %v954 = vsel %vm846, %v899, 0.0
        %v955 = vld [vmem:[%s3] sm:$0x1]
        %v956 = vlaneseq
        %v957 = vshrl.u32 %v956, 7
        %v958 = vsub.s32 0, %v957
        %v959 = vrot.slane %v955, %v958
        %v960 = vmul.f32 %v828, %v959
        %v961 = vmul.f32 %v740, %v959
        %v962 = vmul.f32 %v829, %v959
        %v963 = vmul.f32 %v743, %v959
        %v964 = vmul.f32 %v830, %v959
        %v965 = vmul.f32 %v746, %v959
        %v966 = vmul.f32 %v831, %v959
        %v967 = vmul.f32 %v749, %v959
        %v968 = vmul.f32 %v832, %v959
        %v969 = vmul.f32 %v752, %v959
        %v970 = vmul.f32 %v833, %v959
        %v971 = vmul.f32 %v755, %v959
        %v972 = vmul.f32 %v834, %v959
        %v973 = vmul.f32 %v758, %v959
        %v974 = vmul.f32 %v835, %v959
        %v975 = vmul.f32 %v761, %v959
        %v976 = vmul.f32 %v836, %v959
        %v977 = vmul.f32 %v764, %v959
        %v978 = vmul.f32 %v837, %v959
        %v979 = vmul.f32 %v767, %v959
        %v980 = vmul.f32 %v838, %v959
        %v981 = vmul.f32 %v770, %v959
        %v982 = vmul.f32 %v839, %v959
        %v983 = vmul.f32 %v773, %v959
        %v984 = vmul.f32 %v840, %v959
        %v985 = vmul.f32 %v776, %v959
        %v986 = vmul.f32 %v841, %v959
        %v987 = vmul.f32 %v779, %v959
        %v988 = vmul.f32 %v842, %v959
        %v989 = vmul.f32 %v782, %v959
        %v990 = vmul.f32 %v843, %v959
        %v991 = vmul.f32 %v785, %v959
        %v992 = vadd.f32 %v960, 0.0
        %v993 = vadd.f32 %v961, 0.0
        %v994 = vadd.f32 %v962, 0.0
        %v995 = vadd.f32 %v963, 0.0
        %v996 = vadd.f32 %v964, 0.0
        %v997 = vadd.f32 %v965, 0.0
        %v998 = vadd.f32 %v966, 0.0
        %v999 = vadd.f32 %v967, 0.0
        %v1000 = vadd.f32 %v968, 0.0
        %v1001 = vadd.f32 %v969, 0.0
        %v1002 = vadd.f32 %v970, 0.0
        %v1003 = vadd.f32 %v971, 0.0
        %v1004 = vadd.f32 %v972, 0.0
        %v1005 = vadd.f32 %v973, 0.0
        %v1006 = vadd.f32 %v974, 0.0
        %v1007 = vadd.f32 %v975, 0.0
        %v1008 = vadd.f32 %v976, 0.0
        %v1009 = vadd.f32 %v977, 0.0
        %v1010 = vadd.f32 %v978, 0.0
        %v1011 = vadd.f32 %v979, 0.0
        %v1012 = vadd.f32 %v980, 0.0
        %v1013 = vadd.f32 %v981, 0.0
        %v1014 = vadd.f32 %v982, 0.0
        %v1015 = vadd.f32 %v983, 0.0
        %v1016 = vadd.f32 %v984, 0.0
        %v1017 = vadd.f32 %v985, 0.0
        %v1018 = vadd.f32 %v986, 0.0
        %v1019 = vadd.f32 %v987, 0.0
        %v1020 = vadd.f32 %v988, 0.0
        %v1021 = vadd.f32 %v989, 0.0
        %v1022 = vadd.f32 %v990, 0.0
        %v1023 = vadd.f32 %v991, 0.0
        %v1024 = vld [vmem:[%s3 + $0x3] sm:$0x1]
        %v1025 = vlaneseq
        %v1026 = vshrl.u32 %v1025, 7
        %v1027 = vsub.s32 0, %v1026
        %v1028 = vrot.slane %v1024, %v1027
        %v1029 = vmul.f32 %v829, %v1028
        %v1030 = vmul.f32 %v743, %v1028
        %v1031 = vmul.f32 %v830, %v1028
        %v1032 = vmul.f32 %v746, %v1028
        %v1033 = vmul.f32 %v831, %v1028
        %v1034 = vmul.f32 %v749, %v1028
        %v1035 = vmul.f32 %v832, %v1028
        %v1036 = vmul.f32 %v752, %v1028
        %v1037 = vmul.f32 %v833, %v1028
        %v1038 = vmul.f32 %v755, %v1028
        %v1039 = vmul.f32 %v834, %v1028
        %v1040 = vmul.f32 %v758, %v1028
        %v1041 = vmul.f32 %v835, %v1028
        %v1042 = vmul.f32 %v761, %v1028
        %v1043 = vmul.f32 %v836, %v1028
        %v1044 = vmul.f32 %v764, %v1028
        %v1045 = vmul.f32 %v837, %v1028
        %v1046 = vmul.f32 %v767, %v1028
        %v1047 = vmul.f32 %v838, %v1028
        %v1048 = vmul.f32 %v770, %v1028
        %v1049 = vmul.f32 %v839, %v1028
        %v1050 = vmul.f32 %v773, %v1028
        %v1051 = vmul.f32 %v840, %v1028
        %v1052 = vmul.f32 %v776, %v1028
        %v1053 = vmul.f32 %v841, %v1028
        %v1054 = vmul.f32 %v779, %v1028
        %v1055 = vmul.f32 %v842, %v1028
        %v1056 = vmul.f32 %v782, %v1028
        %v1057 = vmul.f32 %v843, %v1028
        %v1058 = vmul.f32 %v785, %v1028
        %v1059 = vmul.f32 %v844, %v1028
        %v1060 = vmul.f32 %v788, %v1028
        %v1061 = vadd.f32 %v992, %v1029
        %v1062 = vadd.f32 %v993, %v1030
        %v1063 = vadd.f32 %v994, %v1031
        %v1064 = vadd.f32 %v995, %v1032
        %v1065 = vadd.f32 %v996, %v1033
        %v1066 = vadd.f32 %v997, %v1034
        %v1067 = vadd.f32 %v998, %v1035
        %v1068 = vadd.f32 %v999, %v1036
        %v1069 = vadd.f32 %v1000, %v1037
        %v1070 = vadd.f32 %v1001, %v1038
        %v1071 = vadd.f32 %v1002, %v1039
        %v1072 = vadd.f32 %v1003, %v1040
        %v1073 = vadd.f32 %v1004, %v1041
        %v1074 = vadd.f32 %v1005, %v1042
        %v1075 = vadd.f32 %v1006, %v1043
        %v1076 = vadd.f32 %v1007, %v1044
        %v1077 = vadd.f32 %v1008, %v1045
        %v1078 = vadd.f32 %v1009, %v1046
        %v1079 = vadd.f32 %v1010, %v1047
        %v1080 = vadd.f32 %v1011, %v1048
        %v1081 = vadd.f32 %v1012, %v1049
        %v1082 = vadd.f32 %v1013, %v1050
        %v1083 = vadd.f32 %v1014, %v1051
        %v1084 = vadd.f32 %v1015, %v1052
        %v1085 = vadd.f32 %v1016, %v1053
        %v1086 = vadd.f32 %v1017, %v1054
        %v1087 = vadd.f32 %v1018, %v1055
        %v1088 = vadd.f32 %v1019, %v1056
        %v1089 = vadd.f32 %v1020, %v1057
        %v1090 = vadd.f32 %v1021, %v1058
        %v1091 = vadd.f32 %v1022, %v1059
        %v1092 = vadd.f32 %v1023, %v1060
        %v1093 = vld [vmem:[%s3 + $0x6] sm:$0x1]
        %v1094 = vlaneseq
        %v1095 = vshrl.u32 %v1094, 7
        %v1096 = vsub.s32 0, %v1095
        %v1097 = vrot.slane %v1093, %v1096
        %v1098 = vmul.f32 %v830, %v1097
        %v1099 = vmul.f32 %v746, %v1097
        %v1100 = vmul.f32 %v831, %v1097
        %v1101 = vmul.f32 %v749, %v1097
        %v1102 = vmul.f32 %v832, %v1097
        %v1103 = vmul.f32 %v752, %v1097
        %v1104 = vmul.f32 %v833, %v1097
        %v1105 = vmul.f32 %v755, %v1097
        %v1106 = vmul.f32 %v834, %v1097
        %v1107 = vmul.f32 %v758, %v1097
        %v1108 = vmul.f32 %v835, %v1097
        %v1109 = vmul.f32 %v761, %v1097
        %v1110 = vmul.f32 %v836, %v1097
        %v1111 = vmul.f32 %v764, %v1097
        %v1112 = vmul.f32 %v837, %v1097
        %v1113 = vmul.f32 %v767, %v1097
        %v1114 = vmul.f32 %v838, %v1097
        %v1115 = vmul.f32 %v770, %v1097
        %v1116 = vmul.f32 %v839, %v1097
        %v1117 = vmul.f32 %v773, %v1097
        %v1118 = vmul.f32 %v840, %v1097
        %v1119 = vmul.f32 %v776, %v1097
        %v1120 = vmul.f32 %v841, %v1097
        %v1121 = vmul.f32 %v779, %v1097
        %v1122 = vmul.f32 %v842, %v1097
        %v1123 = vmul.f32 %v782, %v1097
        %v1124 = vmul.f32 %v843, %v1097
        %v1125 = vmul.f32 %v785, %v1097
        %v1126 = vmul.f32 %v844, %v1097
        %v1127 = vmul.f32 %v788, %v1097
        %v1128 = vmul.f32 %v845, %v1097
        %v1129 = vmul.f32 %v791, %v1097
        %v1130 = vadd.f32 %v1061, %v1098
        %v1131 = vadd.f32 %v1062, %v1099
        %v1132 = vadd.f32 %v1063, %v1100
        %v1133 = vadd.f32 %v1064, %v1101
        %v1134 = vadd.f32 %v1065, %v1102
        %v1135 = vadd.f32 %v1066, %v1103
        %v1136 = vadd.f32 %v1067, %v1104
        %v1137 = vadd.f32 %v1068, %v1105
        %v1138 = vadd.f32 %v1069, %v1106
        %v1139 = vadd.f32 %v1070, %v1107
        %v1140 = vadd.f32 %v1071, %v1108
        %v1141 = vadd.f32 %v1072, %v1109
        %v1142 = vadd.f32 %v1073, %v1110
        %v1143 = vadd.f32 %v1074, %v1111
        %v1144 = vadd.f32 %v1075, %v1112
        %v1145 = vadd.f32 %v1076, %v1113
        %v1146 = vadd.f32 %v1077, %v1114
        %v1147 = vadd.f32 %v1078, %v1115
        %v1148 = vadd.f32 %v1079, %v1116
        %v1149 = vadd.f32 %v1080, %v1117
        %v1150 = vadd.f32 %v1081, %v1118
        %v1151 = vadd.f32 %v1082, %v1119
        %v1152 = vadd.f32 %v1083, %v1120
        %v1153 = vadd.f32 %v1084, %v1121
        %v1154 = vadd.f32 %v1085, %v1122
        %v1155 = vadd.f32 %v1086, %v1123
        %v1156 = vadd.f32 %v1087, %v1124
        %v1157 = vadd.f32 %v1088, %v1125
        %v1158 = vadd.f32 %v1089, %v1126
        %v1159 = vadd.f32 %v1090, %v1127
        %v1160 = vadd.f32 %v1091, %v1128
        %v1161 = vadd.f32 %v1092, %v1129
        %v1162 = vld [vmem:[%s3 + $0x1] sm:$0x1]
        %v1163 = vlaneseq
        %v1164 = vshrl.u32 %v1163, 7
        %v1165 = vsub.s32 0, %v1164
        %v1166 = vrot.slane %v1162, %v1165
        %v1167 = vmul.f32 %v692, %v1166
        %v1168 = vmul.f32 %v693, %v1166
        %v1169 = vmul.f32 %v694, %v1166
        %v1170 = vmul.f32 %v695, %v1166
        %v1171 = vmul.f32 %v525, %v1166
        %v1172 = vmul.f32 %v530, %v1166
        %v1173 = vmul.f32 %v535, %v1166
        %v1174 = vmul.f32 %v540, %v1166
        %v1175 = vmul.f32 %v545, %v1166
        %v1176 = vmul.f32 %v550, %v1166
        %v1177 = vmul.f32 %v555, %v1166
        %v1178 = vmul.f32 %v560, %v1166
        %v1179 = vmul.f32 %v565, %v1166
        %v1180 = vmul.f32 %v570, %v1166
        %v1181 = vmul.f32 %v575, %v1166
        %v1182 = vmul.f32 %v580, %v1166
        %v1183 = vmul.f32 %v585, %v1166
        %v1184 = vmul.f32 %v590, %v1166
        %v1185 = vmul.f32 %v595, %v1166
        %v1186 = vmul.f32 %v600, %v1166
        %v1187 = vmul.f32 %v605, %v1166
        %v1188 = vmul.f32 %v610, %v1166
        %v1189 = vmul.f32 %v615, %v1166
        %v1190 = vmul.f32 %v620, %v1166
        %v1191 = vmul.f32 %v625, %v1166
        %v1192 = vmul.f32 %v630, %v1166
        %v1193 = vmul.f32 %v635, %v1166
        %v1194 = vmul.f32 %v640, %v1166
        %v1195 = vmul.f32 %v645, %v1166
        %v1196 = vmul.f32 %v650, %v1166
        %v1197 = vmul.f32 %v655, %v1166
        %v1198 = vmul.f32 %v660, %v1166
        %v1199 = vadd.f32 %v1130, %v1167
        %v1200 = vadd.f32 %v1131, %v1168
        %v1201 = vadd.f32 %v1132, %v1169
        %v1202 = vadd.f32 %v1133, %v1170
        %v1203 = vadd.f32 %v1134, %v1171
        %v1204 = vadd.f32 %v1135, %v1172
        %v1205 = vadd.f32 %v1136, %v1173
        %v1206 = vadd.f32 %v1137, %v1174
        %v1207 = vadd.f32 %v1138, %v1175
        %v1208 = vadd.f32 %v1139, %v1176
        %v1209 = vadd.f32 %v1140, %v1177
        %v1210 = vadd.f32 %v1141, %v1178
        %v1211 = vadd.f32 %v1142, %v1179
        %v1212 = vadd.f32 %v1143, %v1180
        %v1213 = vadd.f32 %v1144, %v1181
        %v1214 = vadd.f32 %v1145, %v1182
        %v1215 = vadd.f32 %v1146, %v1183
        %v1216 = vadd.f32 %v1147, %v1184
        %v1217 = vadd.f32 %v1148, %v1185
        %v1218 = vadd.f32 %v1149, %v1186
        %v1219 = vadd.f32 %v1150, %v1187
        %v1220 = vadd.f32 %v1151, %v1188
        %v1221 = vadd.f32 %v1152, %v1189
        %v1222 = vadd.f32 %v1153, %v1190
        %v1223 = vadd.f32 %v1154, %v1191
        %v1224 = vadd.f32 %v1155, %v1192
        %v1225 = vadd.f32 %v1156, %v1193
        %v1226 = vadd.f32 %v1157, %v1194
        %v1227 = vadd.f32 %v1158, %v1195
        %v1228 = vadd.f32 %v1159, %v1196
        %v1229 = vadd.f32 %v1160, %v1197
        %v1230 = vadd.f32 %v1161, %v1198
        %v1231 = vld [vmem:[%s3 + $0x4] sm:$0x1]
        %v1232 = vlaneseq
        %v1233 = vshrl.u32 %v1232, 7
        %v1234 = vsub.s32 0, %v1233
        %v1235 = vrot.slane %v1231, %v1234
        %v1236 = vmul.f32 %v694, %v1235
        %v1237 = vmul.f32 %v695, %v1235
        %v1238 = vmul.f32 %v525, %v1235
        %v1239 = vmul.f32 %v530, %v1235
        %v1240 = vmul.f32 %v535, %v1235
        %v1241 = vmul.f32 %v540, %v1235
        %v1242 = vmul.f32 %v545, %v1235
        %v1243 = vmul.f32 %v550, %v1235
        %v1244 = vmul.f32 %v555, %v1235
        %v1245 = vmul.f32 %v560, %v1235
        %v1246 = vmul.f32 %v565, %v1235
        %v1247 = vmul.f32 %v570, %v1235
        %v1248 = vmul.f32 %v575, %v1235
        %v1249 = vmul.f32 %v580, %v1235
        %v1250 = vmul.f32 %v585, %v1235
        %v1251 = vmul.f32 %v590, %v1235
        %v1252 = vmul.f32 %v595, %v1235
        %v1253 = vmul.f32 %v600, %v1235
        %v1254 = vmul.f32 %v605, %v1235
        %v1255 = vmul.f32 %v610, %v1235
        %v1256 = vmul.f32 %v615, %v1235
        %v1257 = vmul.f32 %v620, %v1235
        %v1258 = vmul.f32 %v625, %v1235
        %v1259 = vmul.f32 %v630, %v1235
        %v1260 = vmul.f32 %v635, %v1235
        %v1261 = vmul.f32 %v640, %v1235
        %v1262 = vmul.f32 %v645, %v1235
        %v1263 = vmul.f32 %v650, %v1235
        %v1264 = vmul.f32 %v655, %v1235
        %v1265 = vmul.f32 %v660, %v1235
        %v1266 = vmul.f32 %v665, %v1235
        %v1267 = vmul.f32 %v670, %v1235
        %v1268 = vadd.f32 %v1199, %v1236
        %v1269 = vadd.f32 %v1200, %v1237
        %v1270 = vadd.f32 %v1201, %v1238
        %v1271 = vadd.f32 %v1202, %v1239
        %v1272 = vadd.f32 %v1203, %v1240
        %v1273 = vadd.f32 %v1204, %v1241
        %v1274 = vadd.f32 %v1205, %v1242
        %v1275 = vadd.f32 %v1206, %v1243
        %v1276 = vadd.f32 %v1207, %v1244
        %v1277 = vadd.f32 %v1208, %v1245
        %v1278 = vadd.f32 %v1209, %v1246
        %v1279 = vadd.f32 %v1210, %v1247
        %v1280 = vadd.f32 %v1211, %v1248
        %v1281 = vadd.f32 %v1212, %v1249
        %v1282 = vadd.f32 %v1213, %v1250
        %v1283 = vadd.f32 %v1214, %v1251
        %v1284 = vadd.f32 %v1215, %v1252
        %v1285 = vadd.f32 %v1216, %v1253
        %v1286 = vadd.f32 %v1217, %v1254
        %v1287 = vadd.f32 %v1218, %v1255
        %v1288 = vadd.f32 %v1219, %v1256
        %v1289 = vadd.f32 %v1220, %v1257
        %v1290 = vadd.f32 %v1221, %v1258
        %v1291 = vadd.f32 %v1222, %v1259
        %v1292 = vadd.f32 %v1223, %v1260
        %v1293 = vadd.f32 %v1224, %v1261
        %v1294 = vadd.f32 %v1225, %v1262
        %v1295 = vadd.f32 %v1226, %v1263
        %v1296 = vadd.f32 %v1227, %v1264
        %v1297 = vadd.f32 %v1228, %v1265
        %v1298 = vadd.f32 %v1229, %v1266
        %v1299 = vadd.f32 %v1230, %v1267
        %v1300 = vld [vmem:[%s3 + $0x7] sm:$0x1]
        %v1301 = vlaneseq
        %v1302 = vshrl.u32 %v1301, 7
        %v1303 = vsub.s32 0, %v1302
        %v1304 = vrot.slane %v1300, %v1303
        %v1305 = vmul.f32 %v525, %v1304
        %v1306 = vmul.f32 %v530, %v1304
        %v1307 = vmul.f32 %v535, %v1304
        %v1308 = vmul.f32 %v540, %v1304
        %v1309 = vmul.f32 %v545, %v1304
        %v1310 = vmul.f32 %v550, %v1304
        %v1311 = vmul.f32 %v555, %v1304
        %v1312 = vmul.f32 %v560, %v1304
        %v1313 = vmul.f32 %v565, %v1304
        %v1314 = vmul.f32 %v570, %v1304
        %v1315 = vmul.f32 %v575, %v1304
        %v1316 = vmul.f32 %v580, %v1304
        %v1317 = vmul.f32 %v585, %v1304
        %v1318 = vmul.f32 %v590, %v1304
        %v1319 = vmul.f32 %v595, %v1304
        %v1320 = vmul.f32 %v600, %v1304
        %v1321 = vmul.f32 %v605, %v1304
        %v1322 = vmul.f32 %v610, %v1304
        %v1323 = vmul.f32 %v615, %v1304
        %v1324 = vmul.f32 %v620, %v1304
        %v1325 = vmul.f32 %v625, %v1304
        %v1326 = vmul.f32 %v630, %v1304
        %v1327 = vmul.f32 %v635, %v1304
        %v1328 = vmul.f32 %v640, %v1304
        %v1329 = vmul.f32 %v645, %v1304
        %v1330 = vmul.f32 %v650, %v1304
        %v1331 = vmul.f32 %v655, %v1304
        %v1332 = vmul.f32 %v660, %v1304
        %v1333 = vmul.f32 %v665, %v1304
        %v1334 = vmul.f32 %v670, %v1304
        %v1335 = vmul.f32 %v675, %v1304
        %v1336 = vmul.f32 %v680, %v1304
        %v1337 = vadd.f32 %v1268, %v1305
        %v1338 = vadd.f32 %v1269, %v1306
        %v1339 = vadd.f32 %v1270, %v1307
        %v1340 = vadd.f32 %v1271, %v1308
        %v1341 = vadd.f32 %v1272, %v1309
        %v1342 = vadd.f32 %v1273, %v1310
        %v1343 = vadd.f32 %v1274, %v1311
        %v1344 = vadd.f32 %v1275, %v1312
        %v1345 = vadd.f32 %v1276, %v1313
        %v1346 = vadd.f32 %v1277, %v1314
        %v1347 = vadd.f32 %v1278, %v1315
        %v1348 = vadd.f32 %v1279, %v1316
        %v1349 = vadd.f32 %v1280, %v1317
        %v1350 = vadd.f32 %v1281, %v1318
        %v1351 = vadd.f32 %v1282, %v1319
        %v1352 = vadd.f32 %v1283, %v1320
        %v1353 = vadd.f32 %v1284, %v1321
        %v1354 = vadd.f32 %v1285, %v1322
        %v1355 = vadd.f32 %v1286, %v1323
        %v1356 = vadd.f32 %v1287, %v1324
        %v1357 = vadd.f32 %v1288, %v1325
        %v1358 = vadd.f32 %v1289, %v1326
        %v1359 = vadd.f32 %v1290, %v1327
        %v1360 = vadd.f32 %v1291, %v1328
        %v1361 = vadd.f32 %v1292, %v1329
        %v1362 = vadd.f32 %v1293, %v1330
        %v1363 = vadd.f32 %v1294, %v1331
        %v1364 = vadd.f32 %v1295, %v1332
        %v1365 = vadd.f32 %v1296, %v1333
        %v1366 = vadd.f32 %v1297, %v1334
        %v1367 = vadd.f32 %v1298, %v1335
        %v1368 = vadd.f32 %v1299, %v1336
        %v1369 = vld [vmem:[%s3 + $0x2] sm:$0x1]
        %v1370 = vlaneseq
        %v1371 = vshrl.u32 %v1370, 7
        %v1372 = vsub.s32 0, %v1371
        %v1373 = vrot.slane %v1369, %v1372
        %v1374 = vmul.f32 %v849, %v1373
        %v1375 = vmul.f32 %v937, %v1373
        %v1376 = vmul.f32 %v852, %v1373
        %v1377 = vmul.f32 %v938, %v1373
        %v1378 = vmul.f32 %v855, %v1373
        %v1379 = vmul.f32 %v939, %v1373
        %v1380 = vmul.f32 %v858, %v1373
        %v1381 = vmul.f32 %v940, %v1373
        %v1382 = vmul.f32 %v861, %v1373
        %v1383 = vmul.f32 %v941, %v1373
        %v1384 = vmul.f32 %v864, %v1373
        %v1385 = vmul.f32 %v942, %v1373
        %v1386 = vmul.f32 %v867, %v1373
        %v1387 = vmul.f32 %v943, %v1373
        %v1388 = vmul.f32 %v870, %v1373
        %v1389 = vmul.f32 %v944, %v1373
        %v1390 = vmul.f32 %v873, %v1373
        %v1391 = vmul.f32 %v945, %v1373
        %v1392 = vmul.f32 %v876, %v1373
        %v1393 = vmul.f32 %v946, %v1373
        %v1394 = vmul.f32 %v879, %v1373
        %v1395 = vmul.f32 %v947, %v1373
        %v1396 = vmul.f32 %v882, %v1373
        %v1397 = vmul.f32 %v948, %v1373
        %v1398 = vmul.f32 %v885, %v1373
        %v1399 = vmul.f32 %v949, %v1373
        %v1400 = vmul.f32 %v888, %v1373
        %v1401 = vmul.f32 %v950, %v1373
        %v1402 = vmul.f32 %v891, %v1373
        %v1403 = vmul.f32 %v951, %v1373
        %v1404 = vmul.f32 %v894, %v1373
        %v1405 = vmul.f32 %v952, %v1373
        %v1406 = vadd.f32 %v1337, %v1374
        %v1407 = vadd.f32 %v1338, %v1375
        %v1408 = vadd.f32 %v1339, %v1376
        %v1409 = vadd.f32 %v1340, %v1377
        %v1410 = vadd.f32 %v1341, %v1378
        %v1411 = vadd.f32 %v1342, %v1379
        %v1412 = vadd.f32 %v1343, %v1380
        %v1413 = vadd.f32 %v1344, %v1381
        %v1414 = vadd.f32 %v1345, %v1382
        %v1415 = vadd.f32 %v1346, %v1383
        %v1416 = vadd.f32 %v1347, %v1384
        %v1417 = vadd.f32 %v1348, %v1385
        %v1418 = vadd.f32 %v1349, %v1386
        %v1419 = vadd.f32 %v1350, %v1387
        %v1420 = vadd.f32 %v1351, %v1388
        %v1421 = vadd.f32 %v1352, %v1389
        %v1422 = vadd.f32 %v1353, %v1390
        %v1423 = vadd.f32 %v1354, %v1391
        %v1424 = vadd.f32 %v1355, %v1392
        %v1425 = vadd.f32 %v1356, %v1393
        %v1426 = vadd.f32 %v1357, %v1394
        %v1427 = vadd.f32 %v1358, %v1395
        %v1428 = vadd.f32 %v1359, %v1396
        %v1429 = vadd.f32 %v1360, %v1397
        %v1430 = vadd.f32 %v1361, %v1398
        %v1431 = vadd.f32 %v1362, %v1399
        %v1432 = vadd.f32 %v1363, %v1400
        %v1433 = vadd.f32 %v1364, %v1401
        %v1434 = vadd.f32 %v1365, %v1402
        %v1435 = vadd.f32 %v1366, %v1403
        %v1436 = vadd.f32 %v1367, %v1404
        %v1437 = vadd.f32 %v1368, %v1405
        %v1438 = vld [vmem:[%s3 + $0x5] sm:$0x1]
        %v1439 = vlaneseq
        %v1440 = vshrl.u32 %v1439, 7
        %v1441 = vsub.s32 0, %v1440
        %v1442 = vrot.slane %v1438, %v1441
        %v1443 = vmul.f32 %v852, %v1442
        %v1444 = vmul.f32 %v938, %v1442
        %v1445 = vmul.f32 %v855, %v1442
        %v1446 = vmul.f32 %v939, %v1442
        %v1447 = vmul.f32 %v858, %v1442
        %v1448 = vmul.f32 %v940, %v1442
        %v1449 = vmul.f32 %v861, %v1442
        %v1450 = vmul.f32 %v941, %v1442
        %v1451 = vmul.f32 %v864, %v1442
        %v1452 = vmul.f32 %v942, %v1442
        %v1453 = vmul.f32 %v867, %v1442
        %v1454 = vmul.f32 %v943, %v1442
        %v1455 = vmul.f32 %v870, %v1442
        %v1456 = vmul.f32 %v944, %v1442
        %v1457 = vmul.f32 %v873, %v1442
        %v1458 = vmul.f32 %v945, %v1442
        %v1459 = vmul.f32 %v876, %v1442
        %v1460 = vmul.f32 %v946, %v1442
        %v1461 = vmul.f32 %v879, %v1442
        %v1462 = vmul.f32 %v947, %v1442
        %v1463 = vmul.f32 %v882, %v1442
        %v1464 = vmul.f32 %v948, %v1442
        %v1465 = vmul.f32 %v885, %v1442
        %v1466 = vmul.f32 %v949, %v1442
        %v1467 = vmul.f32 %v888, %v1442
        %v1468 = vmul.f32 %v950, %v1442
        %v1469 = vmul.f32 %v891, %v1442
        %v1470 = vmul.f32 %v951, %v1442
        %v1471 = vmul.f32 %v894, %v1442
        %v1472 = vmul.f32 %v952, %v1442
        %v1473 = vmul.f32 %v897, %v1442
        %v1474 = vmul.f32 %v953, %v1442
        %v1475 = vadd.f32 %v1406, %v1443
        %v1476 = vadd.f32 %v1407, %v1444
        %v1477 = vadd.f32 %v1408, %v1445
        %v1478 = vadd.f32 %v1409, %v1446
        %v1479 = vadd.f32 %v1410, %v1447
        %v1480 = vadd.f32 %v1411, %v1448
        %v1481 = vadd.f32 %v1412, %v1449
        %v1482 = vadd.f32 %v1413, %v1450
        %v1483 = vadd.f32 %v1414, %v1451
        %v1484 = vadd.f32 %v1415, %v1452
        %v1485 = vadd.f32 %v1416, %v1453
        %v1486 = vadd.f32 %v1417, %v1454
        %v1487 = vadd.f32 %v1418, %v1455
        %v1488 = vadd.f32 %v1419, %v1456
        %v1489 = vadd.f32 %v1420, %v1457
        %v1490 = vadd.f32 %v1421, %v1458
        %v1491 = vadd.f32 %v1422, %v1459
        %v1492 = vadd.f32 %v1423, %v1460
        %v1493 = vadd.f32 %v1424, %v1461
        %v1494 = vadd.f32 %v1425, %v1462
        %v1495 = vadd.f32 %v1426, %v1463
        %v1496 = vadd.f32 %v1427, %v1464
        %v1497 = vadd.f32 %v1428, %v1465
        %v1498 = vadd.f32 %v1429, %v1466
        %v1499 = vadd.f32 %v1430, %v1467
        %v1500 = vadd.f32 %v1431, %v1468
        %v1501 = vadd.f32 %v1432, %v1469
        %v1502 = vadd.f32 %v1433, %v1470
        %v1503 = vadd.f32 %v1434, %v1471
        %v1504 = vadd.f32 %v1435, %v1472
        %v1505 = vadd.f32 %v1436, %v1473
        %v1506 = vadd.f32 %v1437, %v1474
        %v1507 = vld [vmem:[%s3 + $0x8] sm:$0x1]
        %v1508 = vlaneseq
        %v1509 = vshrl.u32 %v1508, 7
        %v1510 = vsub.s32 0, %v1509
        %v1511 = vrot.slane %v1507, %v1510
        %v1512 = vmul.f32 %v855, %v1511
        %v1513 = vmul.f32 %v939, %v1511
        %v1514 = vmul.f32 %v858, %v1511
        %v1515 = vmul.f32 %v940, %v1511
        %v1516 = vmul.f32 %v861, %v1511
        %v1517 = vmul.f32 %v941, %v1511
        %v1518 = vmul.f32 %v864, %v1511
        %v1519 = vmul.f32 %v942, %v1511
        %v1520 = vmul.f32 %v867, %v1511
        %v1521 = vmul.f32 %v943, %v1511
        %v1522 = vmul.f32 %v870, %v1511
        %v1523 = vmul.f32 %v944, %v1511
        %v1524 = vmul.f32 %v873, %v1511
        %v1525 = vmul.f32 %v945, %v1511
        %v1526 = vmul.f32 %v876, %v1511
        %v1527 = vmul.f32 %v946, %v1511
        %v1528 = vmul.f32 %v879, %v1511
        %v1529 = vmul.f32 %v947, %v1511
        %v1530 = vmul.f32 %v882, %v1511
        %v1531 = vmul.f32 %v948, %v1511
        %v1532 = vmul.f32 %v885, %v1511
        %v1533 = vmul.f32 %v949, %v1511
        %v1534 = vmul.f32 %v888, %v1511
        %v1535 = vmul.f32 %v950, %v1511
        %v1536 = vmul.f32 %v891, %v1511
        %v1537 = vmul.f32 %v951, %v1511
        %v1538 = vmul.f32 %v894, %v1511
        %v1539 = vmul.f32 %v952, %v1511
        %v1540 = vmul.f32 %v897, %v1511
        %v1541 = vmul.f32 %v953, %v1511
        %v1542 = vmul.f32 %v900, %v1511
        %v1543 = vmul.f32 %v954, %v1511
        %v1544 = vadd.f32 %v1475, %v1512
        %v1545 = vadd.f32 %v1476, %v1513
        %v1546 = vadd.f32 %v1477, %v1514
        %v1547 = vadd.f32 %v1478, %v1515
        %v1548 = vadd.f32 %v1479, %v1516
        %v1549 = vadd.f32 %v1480, %v1517
        %v1550 = vadd.f32 %v1481, %v1518
        %v1551 = vadd.f32 %v1482, %v1519
        %v1552 = vadd.f32 %v1483, %v1520
        %v1553 = vadd.f32 %v1484, %v1521
        %v1554 = vadd.f32 %v1485, %v1522
        %v1555 = vadd.f32 %v1486, %v1523
        %v1556 = vadd.f32 %v1487, %v1524
        %v1557 = vadd.f32 %v1488, %v1525
        %v1558 = vadd.f32 %v1489, %v1526
        %v1559 = vadd.f32 %v1490, %v1527
        %v1560 = vadd.f32 %v1491, %v1528
        %v1561 = vadd.f32 %v1492, %v1529
        %v1562 = vadd.f32 %v1493, %v1530
        %v1563 = vadd.f32 %v1494, %v1531
        %v1564 = vadd.f32 %v1495, %v1532
        %v1565 = vadd.f32 %v1496, %v1533
        %v1566 = vadd.f32 %v1497, %v1534
        %v1567 = vadd.f32 %v1498, %v1535
        %v1568 = vadd.f32 %v1499, %v1536
        %v1569 = vadd.f32 %v1500, %v1537
        %v1570 = vadd.f32 %v1501, %v1538
        %v1571 = vadd.f32 %v1502, %v1539
        %v1572 = vadd.f32 %v1503, %v1540
        %v1573 = vadd.f32 %v1504, %v1541
        %v1574 = vadd.f32 %v1505, %v1542
        %v1575 = vadd.f32 %v1506, %v1543
        %v1576 = vld [vmem:[%s4] sm:$0x1]
        %v1578 = vlaneseq
        %v1579 = vshrl.u32 %v1578, 7
        %v1580 = vsub.s32 0, %v1579
        %v1581 = vrot.slane %v1576, %v1580
        %v1583 = vadd.f32 %v1544, %v1581
        %v1584 = vadd.f32 %v1545, %v1581
        %v1585 = vadd.f32 %v1546, %v1581
        %v1586 = vadd.f32 %v1547, %v1581
        %v1587 = vadd.f32 %v1548, %v1581
        %v1588 = vadd.f32 %v1549, %v1581
        %v1589 = vadd.f32 %v1550, %v1581
        %v1590 = vadd.f32 %v1551, %v1581
        %v1591 = vadd.f32 %v1552, %v1581
        %v1592 = vadd.f32 %v1553, %v1581
        %v1593 = vadd.f32 %v1554, %v1581
        %v1594 = vadd.f32 %v1555, %v1581
        %v1595 = vadd.f32 %v1556, %v1581
        %v1596 = vadd.f32 %v1557, %v1581
        %v1597 = vadd.f32 %v1558, %v1581
        %v1598 = vadd.f32 %v1559, %v1581
        %v1599 = vadd.f32 %v1560, %v1581
        %v1600 = vadd.f32 %v1561, %v1581
        %v1601 = vadd.f32 %v1562, %v1581
        %v1602 = vadd.f32 %v1563, %v1581
        %v1603 = vadd.f32 %v1564, %v1581
        %v1604 = vadd.f32 %v1565, %v1581
        %v1605 = vadd.f32 %v1566, %v1581
        %v1606 = vadd.f32 %v1567, %v1581
        %v1607 = vadd.f32 %v1568, %v1581
        %v1608 = vadd.f32 %v1569, %v1581
        %v1609 = vadd.f32 %v1570, %v1581
        %v1610 = vadd.f32 %v1571, %v1581
        %v1611 = vadd.f32 %v1572, %v1581
        %v1612 = vadd.f32 %v1573, %v1581
        %v1613 = vadd.f32 %v1574, %v1581
        %v1614 = vadd.f32 %v1575, %v1581
        %v1615 = vld [vmem:[%s5] sm:$0xff]
        %v1616 = vld [vmem:[%s5 + $0x8] sm:$0xff]
        %v1617 = vld [vmem:[%s5 + $0x10] sm:$0xff]
        %v1618 = vld [vmem:[%s5 + $0x18] sm:$0xff]
        %v1619 = vld [vmem:[%s5 + $0x20] sm:$0xff]
        %v1620 = vld [vmem:[%s5 + $0x28] sm:$0xff]
        %v1621 = vld [vmem:[%s5 + $0x30] sm:$0xff]
        %v1622 = vld [vmem:[%s5 + $0x38] sm:$0xff]
        %v1623 = vld [vmem:[%s6] sm:$0x1]
        %v1625 = vlaneseq
        %v1626 = vshrl.u32 %v1625, 7
        %v1627 = vsub.s32 0, %v1626
        %v1628 = vrot.slane %v1623, %v1627
        %v1631 = vsel %vm696, %v1583, 0
        %v1634 = vsel %vm696, %v1584, 0
        %v1637 = vsel %vm696, %v1585, 0
        %v1640 = vsel %vm696, %v1586, 0
        %v1643 = vsel %vm696, %v1587, 0
        %v1646 = vsel %vm696, %v1588, 0
        %v1649 = vsel %vm696, %v1589, 0
        %v1652 = vsel %vm696, %v1590, 0
        %v1655 = vsel %vm696, %v1591, 0
        %v1658 = vsel %vm696, %v1592, 0
        %v1661 = vsel %vm696, %v1593, 0
        %v1664 = vsel %vm696, %v1594, 0
        %v1667 = vsel %vm696, %v1595, 0
        %v1670 = vsel %vm696, %v1596, 0
        %v1673 = vsel %vm696, %v1597, 0
        %v1676 = vsel %vm696, %v1598, 0
        %v1679 = vsel %vm696, %v1599, 0
        %v1682 = vsel %vm696, %v1600, 0
        %v1685 = vsel %vm696, %v1601, 0
        %v1688 = vsel %vm696, %v1602, 0
        %v1691 = vsel %vm696, %v1603, 0
        %v1694 = vsel %vm696, %v1604, 0
        %v1697 = vsel %vm696, %v1605, 0
        %v1700 = vsel %vm696, %v1606, 0
        %v1703 = vsel %vm696, %v1607, 0
        %v1706 = vsel %vm696, %v1608, 0
        %v1709 = vsel %vm696, %v1609, 0
        %v1712 = vsel %vm696, %v1610, 0
        %v1715 = vsel %vm696, %v1611, 0
        %v1718 = vsel %vm696, %v1612, 0
        %v1721 = vsel %vm696, %v1613, 0
        %v1724 = vsel %vm696, %v1614, 0
        %1726 = vmatprep.subr.mxu0 0.0
        %1727 = vmatpush1.msra.mxu0 %v1615
        %1728 = vmatprep.subr.mxu0 0.0
        %1729 = vmatpush1.msra.mxu0 %v1616
        %1730 = vmatprep.subr.mxu0 0.0
        %1731 = vmatpush1.msra.mxu0 %v1617
        %1732 = vmatprep.subr.mxu0 0.0
        %1733 = vmatpush1.msra.mxu0 %v1618
        %1734 = vmatprep.subr.mxu0 0.0
        %1735 = vmatpush1.msra.mxu0 %v1619
        %1736 = vmatprep.subr.mxu0 0.0
        %1737 = vmatpush1.msra.mxu0 %v1620
        %1738 = vmatprep.subr.mxu0 0.0
        %1739 = vmatpush1.msra.mxu0 %v1621
        %1740 = vmatprep.subr.mxu0 0.0
        %1741 = vmatpush1.msra.mxu0 %v1622
        %1742 = vmatprep.subr.mxu0 0.0
        %1743 = vmatpush1.msra.mxu0 0.0
        %1744 = vmatprep.subr.mxu0 0.0
        %1745 = vmatpush1.msra.mxu0 0.0
        %1746 = vmatprep.subr.mxu0 0.0
        %1747 = vmatpush1.msra.mxu0 0.0
        %1748 = vmatprep.subr.mxu0 0.0
        %1749 = vmatpush1.msra.mxu0 0.0
        %1750 = vmatprep.subr.mxu0 0.0
        %1751 = vmatpush1.msra.mxu0 0.0
        %1752 = vmatprep.subr.mxu0 0.0
        %1753 = vmatpush1.msra.mxu0 0.0
        %1754 = vmatprep.subr.mxu0 0.0
        %1755 = vmatpush1.msra.mxu0 0.0
        %1756 = vmatprep.subr.mxu0 0.0
        %1757 = vmatpush1.msra.mxu0 0.0
        %1758 = vmatprep.subr.mxu0 0.0
        %1759 = vmatpush1.msra.mxu0 0.0
        %1760 = vmatprep.subr.mxu0 0.0
        %1761 = vmatpush1.msra.mxu0 0.0
        %1762 = vmatprep.subr.mxu0 0.0
        %1763 = vmatpush1.msra.mxu0 0.0
        %1764 = vmatprep.subr.mxu0 0.0
        %1765 = vmatpush1.msra.mxu0 0.0
        %1766 = vmatprep.subr.mxu0 0.0
        %1767 = vmatpush1.msra.mxu0 0.0
        %1768 = vmatprep.subr.mxu0 0.0
        %1769 = vmatpush1.msra.mxu0 0.0
        %1770 = vmatprep.subr.mxu0 0.0
        %1771 = vmatpush1.msra.mxu0 0.0
        %1772 = vmatprep.subr.mxu0 0.0
        %1773 = vmatpush1.msra.mxu0 0.0
        %1774 = vmatprep.subr.mxu0 0.0
        %1775 = vmatpush1.msra.mxu0 0.0
        %1776 = vmatprep.subr.mxu0 0.0
        %1777 = vmatpush1.msra.mxu0 0.0
        %1778 = vmatprep.subr.mxu0 0.0
        %1779 = vmatpush1.msra.mxu0 0.0
        %1780 = vmatprep.subr.mxu0 0.0
        %1781 = vmatpush1.msra.mxu0 0.0
        %1782 = vmatprep.subr.mxu0 0.0
        %1783 = vmatpush1.msra.mxu0 0.0
        %1784 = vmatprep.subr.mxu0 0.0
        %1785 = vmatpush1.msra.mxu0 0.0
        %1786 = vmatprep.subr.mxu0 0.0
        %1787 = vmatpush1.msra.mxu0 0.0
        %1788 = vmatprep.subr.mxu0 0.0
        %1789 = vmatpush1.msra.mxu0 0.0
        %1790 = vmatprep.mubr.f32.mxu0 0.0
        %1791 = vmatmul.mubr.f32.gmra.mrb[0].mxu0 %v1631
        %v1792 = vpop.f32.mrb[0].mxu0
        %v1793 = vadd.f32 %v1628, %v1792
        %v1794 = vpop.f32.mrb[0].mxu0
        %1795 = vmatprep.mubr.f32.mxu0 0.0
        %1796 = vmatmul.mubr.f32.gmra.mrb[0].mxu0 %v1634
        %v1797 = vpop.f32.mrb[0].mxu0
        %v1798 = vadd.f32 %v1628, %v1797
        %v1799 = vpop.f32.mrb[0].mxu0
        %1800 = vmatprep.mubr.f32.mxu0 0.0
        %1801 = vmatmul.mubr.f32.gmra.mrb[0].mxu0 %v1637
        %v1802 = vpop.f32.mrb[0].mxu0
        %v1803 = vadd.f32 %v1628, %v1802
        %v1804 = vpop.f32.mrb[0].mxu0
        %1805 = vmatprep.mubr.f32.mxu0 0.0
        %1806 = vmatmul.mubr.f32.gmra.mrb[0].mxu0 %v1640
        %v1807 = vpop.f32.mrb[0].mxu0
        %v1808 = vadd.f32 %v1628, %v1807
        %v1809 = vpop.f32.mrb[0].mxu0
        %1810 = vmatprep.mubr.f32.mxu0 0.0
        %1811 = vmatmul.mubr.f32.gmra.mrb[0].mxu0 %v1643
        %v1812 = vpop.f32.mrb[0].mxu0
        %v1813 = vadd.f32 %v1628, %v1812
        %v1814 = vpop.f32.mrb[0].mxu0
        %1815 = vmatprep.mubr.f32.mxu0 0.0
        %1816 = vmatmul.mubr.f32.gmra.mrb[0].mxu0 %v1646
        %v1817 = vpop.f32.mrb[0].mxu0
        %v1818 = vadd.f32 %v1628, %v1817
        %v1819 = vpop.f32.mrb[0].mxu0
        %1820 = vmatprep.mubr.f32.mxu0 0.0
        %1821 = vmatmul.mubr.f32.gmra.mrb[0].mxu0 %v1649
        %v1822 = vpop.f32.mrb[0].mxu0
        %v1823 = vadd.f32 %v1628, %v1822
        %v1824 = vpop.f32.mrb[0].mxu0
        %1825 = vmatprep.mubr.f32.mxu0 0.0
        %1826 = vmatmul.mubr.f32.gmra.mrb[0].mxu0 %v1652
        %v1827 = vpop.f32.mrb[0].mxu0
        %v1828 = vadd.f32 %v1628, %v1827
        %v1829 = vpop.f32.mrb[0].mxu0
        %1830 = vmatprep.mubr.f32.mxu0 0.0
        %1831 = vmatmul.mubr.f32.gmra.mrb[0].mxu0 %v1655
        %v1832 = vpop.f32.mrb[0].mxu0
        %v1833 = vadd.f32 %v1628, %v1832
        %v1834 = vpop.f32.mrb[0].mxu0
        %1835 = vmatprep.mubr.f32.mxu0 0.0
        %1836 = vmatmul.mubr.f32.gmra.mrb[0].mxu0 %v1658
        %v1837 = vpop.f32.mrb[0].mxu0
        %v1838 = vadd.f32 %v1628, %v1837
        %v1839 = vpop.f32.mrb[0].mxu0
        %1840 = vmatprep.mubr.f32.mxu0 0.0
        %1841 = vmatmul.mubr.f32.gmra.mrb[0].mxu0 %v1661
        %v1842 = vpop.f32.mrb[0].mxu0
        %v1843 = vadd.f32 %v1628, %v1842
        %v1844 = vpop.f32.mrb[0].mxu0
        %1845 = vmatprep.mubr.f32.mxu0 0.0
        %1846 = vmatmul.mubr.f32.gmra.mrb[0].mxu0 %v1664
        %v1847 = vpop.f32.mrb[0].mxu0
        %v1848 = vadd.f32 %v1628, %v1847
        %v1849 = vpop.f32.mrb[0].mxu0
        %1850 = vmatprep.mubr.f32.mxu0 0.0
        %1851 = vmatmul.mubr.f32.gmra.mrb[0].mxu0 %v1667
        %v1852 = vpop.f32.mrb[0].mxu0
        %v1853 = vadd.f32 %v1628, %v1852
        %v1854 = vpop.f32.mrb[0].mxu0
        %1855 = vmatprep.mubr.f32.mxu0 0.0
        %1856 = vmatmul.mubr.f32.gmra.mrb[0].mxu0 %v1670
        %v1857 = vpop.f32.mrb[0].mxu0
        %v1858 = vadd.f32 %v1628, %v1857
        %v1859 = vpop.f32.mrb[0].mxu0
        %1860 = vmatprep.mubr.f32.mxu0 0.0
        %1861 = vmatmul.mubr.f32.gmra.mrb[0].mxu0 %v1673
        %v1862 = vpop.f32.mrb[0].mxu0
        %v1863 = vadd.f32 %v1628, %v1862
        %v1864 = vpop.f32.mrb[0].mxu0
        %1865 = vmatprep.mubr.f32.mxu0 0.0
        %1866 = vmatmul.mubr.f32.gmra.mrb[0].mxu0 %v1676
        %v1867 = vpop.f32.mrb[0].mxu0
        %v1868 = vadd.f32 %v1628, %v1867
        %v1869 = vpop.f32.mrb[0].mxu0
        %1870 = vmatprep.mubr.f32.mxu0 0.0
        %1871 = vmatmul.mubr.f32.gmra.mrb[0].mxu0 %v1679
        %v1872 = vpop.f32.mrb[0].mxu0
        %v1873 = vadd.f32 %v1628, %v1872
        %v1874 = vpop.f32.mrb[0].mxu0
        %1875 = vmatprep.mubr.f32.mxu0 0.0
        %1876 = vmatmul.mubr.f32.gmra.mrb[0].mxu0 %v1682
        %v1877 = vpop.f32.mrb[0].mxu0
        %v1878 = vadd.f32 %v1628, %v1877
        %v1879 = vpop.f32.mrb[0].mxu0
        %1880 = vmatprep.mubr.f32.mxu0 0.0
        %1881 = vmatmul.mubr.f32.gmra.mrb[0].mxu0 %v1685
        %v1882 = vpop.f32.mrb[0].mxu0
        %v1883 = vadd.f32 %v1628, %v1882
        %v1884 = vpop.f32.mrb[0].mxu0
        %1885 = vmatprep.mubr.f32.mxu0 0.0
        %1886 = vmatmul.mubr.f32.gmra.mrb[0].mxu0 %v1688
        %v1887 = vpop.f32.mrb[0].mxu0
        %v1888 = vadd.f32 %v1628, %v1887
        %v1889 = vpop.f32.mrb[0].mxu0
        %1890 = vmatprep.mubr.f32.mxu0 0.0
        %1891 = vmatmul.mubr.f32.gmra.mrb[0].mxu0 %v1691
        %v1892 = vpop.f32.mrb[0].mxu0
        %v1893 = vadd.f32 %v1628, %v1892
        %v1894 = vpop.f32.mrb[0].mxu0
        %1895 = vmatprep.mubr.f32.mxu0 0.0
        %1896 = vmatmul.mubr.f32.gmra.mrb[0].mxu0 %v1694
        %v1897 = vpop.f32.mrb[0].mxu0
        %v1898 = vadd.f32 %v1628, %v1897
        %v1899 = vpop.f32.mrb[0].mxu0
        %1900 = vmatprep.mubr.f32.mxu0 0.0
        %1901 = vmatmul.mubr.f32.gmra.mrb[0].mxu0 %v1697
        %v1902 = vpop.f32.mrb[0].mxu0
        %v1903 = vadd.f32 %v1628, %v1902
        %v1904 = vpop.f32.mrb[0].mxu0
        %1905 = vmatprep.mubr.f32.mxu0 0.0
        %1906 = vmatmul.mubr.f32.gmra.mrb[0].mxu0 %v1700
        %v1907 = vpop.f32.mrb[0].mxu0
        %v1908 = vadd.f32 %v1628, %v1907
        %v1909 = vpop.f32.mrb[0].mxu0
        %1910 = vmatprep.mubr.f32.mxu0 0.0
        %1911 = vmatmul.mubr.f32.gmra.mrb[0].mxu0 %v1703
        %v1912 = vpop.f32.mrb[0].mxu0
        %v1913 = vadd.f32 %v1628, %v1912
        %v1914 = vpop.f32.mrb[0].mxu0
        %1915 = vmatprep.mubr.f32.mxu0 0.0
        %1916 = vmatmul.mubr.f32.gmra.mrb[0].mxu0 %v1706
        %v1917 = vpop.f32.mrb[0].mxu0
        %v1918 = vadd.f32 %v1628, %v1917
        %v1919 = vpop.f32.mrb[0].mxu0
        %1920 = vmatprep.mubr.f32.mxu0 0.0
        %1921 = vmatmul.mubr.f32.gmra.mrb[0].mxu0 %v1709
        %v1922 = vpop.f32.mrb[0].mxu0
        %v1923 = vadd.f32 %v1628, %v1922
        %v1924 = vpop.f32.mrb[0].mxu0
        %1925 = vmatprep.mubr.f32.mxu0 0.0
        %1926 = vmatmul.mubr.f32.gmra.mrb[0].mxu0 %v1712
        %v1927 = vpop.f32.mrb[0].mxu0
        %v1928 = vadd.f32 %v1628, %v1927
        %v1929 = vpop.f32.mrb[0].mxu0
        %1930 = vmatprep.mubr.f32.mxu0 0.0
        %1931 = vmatmul.mubr.f32.gmra.mrb[0].mxu0 %v1715
        %v1932 = vpop.f32.mrb[0].mxu0
        %v1933 = vadd.f32 %v1628, %v1932
        %v1934 = vpop.f32.mrb[0].mxu0
        %1935 = vmatprep.mubr.f32.mxu0 0.0
        %1936 = vmatmul.mubr.f32.gmra.mrb[0].mxu0 %v1718
        %v1937 = vpop.f32.mrb[0].mxu0
        %v1938 = vadd.f32 %v1628, %v1937
        %v1939 = vpop.f32.mrb[0].mxu0
        %1940 = vmatprep.mubr.f32.mxu0 0.0
        %1941 = vmatmul.mubr.f32.gmra.mrb[0].mxu0 %v1721
        %v1942 = vpop.f32.mrb[0].mxu0
        %v1943 = vadd.f32 %v1628, %v1942
        %v1944 = vpop.f32.mrb[0].mxu0
        %1945 = vmatprep.mubr.f32.mxu0 0.0
        %1946 = vmatmul.mubr.f32.gmra.mrb[0].mxu0 %v1724
        %v1947 = vpop.f32.mrb[0].mxu0
        %v1948 = vadd.f32 %v1628, %v1947
        %v1949 = vpop.f32.mrb[0].mxu0
        %1950 = vdwg.mxu0
        %1951 = vrot.lane.b32.xlu0 %v525, 64
        %v1952 = vpop.permute.xlu0 %1951
        %1953 = vrot.lane.b32.xlu0 %v530, 64
        %v1954 = vpop.permute.xlu0 %1953
        %1955 = vrot.lane.b32.xlu0 %v535, 64
        %v1956 = vpop.permute.xlu0 %1955
        %1957 = vrot.lane.b32.xlu0 %v540, 64
        %v1958 = vpop.permute.xlu0 %1957
        %1959 = vrot.lane.b32.xlu0 %v545, 64
        %v1960 = vpop.permute.xlu0 %1959
        %1961 = vrot.lane.b32.xlu0 %v550, 64
        %v1962 = vpop.permute.xlu0 %1961
        %1963 = vrot.lane.b32.xlu0 %v555, 64
        %v1964 = vpop.permute.xlu0 %1963
        %1965 = vrot.lane.b32.xlu0 %v560, 64
        %v1966 = vpop.permute.xlu0 %1965
        %1967 = vrot.lane.b32.xlu0 %v565, 64
        %v1968 = vpop.permute.xlu0 %1967
        %1969 = vrot.lane.b32.xlu0 %v570, 64
        %v1970 = vpop.permute.xlu0 %1969
        %1971 = vrot.lane.b32.xlu0 %v575, 64
        %v1972 = vpop.permute.xlu0 %1971
        %1973 = vrot.lane.b32.xlu0 %v580, 64
        %v1974 = vpop.permute.xlu0 %1973
        %1975 = vrot.lane.b32.xlu0 %v585, 64
        %v1976 = vpop.permute.xlu0 %1975
        %1977 = vrot.lane.b32.xlu0 %v590, 64
        %v1978 = vpop.permute.xlu0 %1977
        %1979 = vrot.lane.b32.xlu0 %v595, 64
        %v1980 = vpop.permute.xlu0 %1979
        %1981 = vrot.lane.b32.xlu0 %v600, 64
        %v1982 = vpop.permute.xlu0 %1981
        %1983 = vrot.lane.b32.xlu0 %v605, 64
        %v1984 = vpop.permute.xlu0 %1983
        %1985 = vrot.lane.b32.xlu0 %v610, 64
        %v1986 = vpop.permute.xlu0 %1985
        %1987 = vrot.lane.b32.xlu0 %v615, 64
        %v1988 = vpop.permute.xlu0 %1987
        %1989 = vrot.lane.b32.xlu0 %v620, 64
        %v1990 = vpop.permute.xlu0 %1989
        %1991 = vrot.lane.b32.xlu0 %v625, 64
        %v1992 = vpop.permute.xlu0 %1991
        %1993 = vrot.lane.b32.xlu0 %v630, 64
        %v1994 = vpop.permute.xlu0 %1993
        %1995 = vrot.lane.b32.xlu0 %v635, 64
        %v1996 = vpop.permute.xlu0 %1995
        %1997 = vrot.lane.b32.xlu0 %v640, 64
        %v1998 = vpop.permute.xlu0 %1997
        %1999 = vrot.lane.b32.xlu0 %v645, 64
        %v2000 = vpop.permute.xlu0 %1999
        %2001 = vrot.lane.b32.xlu0 %v650, 64
        %v2002 = vpop.permute.xlu0 %2001
        %2003 = vrot.lane.b32.xlu0 %v655, 64
        %v2004 = vpop.permute.xlu0 %2003
        %2005 = vrot.lane.b32.xlu0 %v660, 64
        %v2006 = vpop.permute.xlu0 %2005
        %2007 = vrot.lane.b32.xlu0 %v665, 64
        %v2008 = vpop.permute.xlu0 %2007
        %2009 = vrot.lane.b32.xlu0 %v670, 64
        %v2010 = vpop.permute.xlu0 %2009
        %2011 = vrot.lane.b32.xlu0 %v675, 64
        %v2012 = vpop.permute.xlu0 %2011
        %2013 = vrot.lane.b32.xlu0 %v680, 64
        %v2014 = vpop.permute.xlu0 %2013
        %v2047 = vmul.f32 %v1793, %v1952
        %v2048 = vmul.f32 %v1798, %v1954
        %v2049 = vmul.f32 %v1803, %v1956
        %v2050 = vmul.f32 %v1808, %v1958
        %v2051 = vmul.f32 %v1813, %v1960
        %v2052 = vmul.f32 %v1818, %v1962
        %v2053 = vmul.f32 %v1823, %v1964
        %v2054 = vmul.f32 %v1828, %v1966
        %v2055 = vmul.f32 %v1833, %v1968
        %v2056 = vmul.f32 %v1838, %v1970
        %v2057 = vmul.f32 %v1843, %v1972
        %v2058 = vmul.f32 %v1848, %v1974
        %v2059 = vmul.f32 %v1853, %v1976
        %v2060 = vmul.f32 %v1858, %v1978
        %v2061 = vmul.f32 %v1863, %v1980
        %v2062 = vmul.f32 %v1868, %v1982
        %v2063 = vmul.f32 %v1873, %v1984
        %v2064 = vmul.f32 %v1878, %v1986
        %v2065 = vmul.f32 %v1883, %v1988
        %v2066 = vmul.f32 %v1888, %v1990
        %v2067 = vmul.f32 %v1893, %v1992
        %v2068 = vmul.f32 %v1898, %v1994
        %v2069 = vmul.f32 %v1903, %v1996
        %v2070 = vmul.f32 %v1908, %v1998
        %v2071 = vmul.f32 %v1913, %v2000
        %v2072 = vmul.f32 %v1918, %v2002
        %v2073 = vmul.f32 %v1923, %v2004
        %v2074 = vmul.f32 %v1928, %v2006
        %v2075 = vmul.f32 %v1933, %v2008
        %v2076 = vmul.f32 %v1938, %v2010
        %v2077 = vmul.f32 %v1943, %v2012
        %v2078 = vmul.f32 %v1948, %v2014
        %2079 = vst.msk [vmem:[%s315] sm:$0xff] %vm696, %v2047
        %2080 = vst.msk [vmem:[%s315 + $0x8] sm:$0xff] %vm696, %v2048
        %2081 = vst.msk [vmem:[%s315 + $0x10] sm:$0xff] %vm696, %v2049
        %2082 = vst.msk [vmem:[%s315 + $0x18] sm:$0xff] %vm696, %v2050
        %2083 = vst.msk [vmem:[%s315 + $0x20] sm:$0xff] %vm696, %v2051
        %2084 = vst.msk [vmem:[%s315 + $0x28] sm:$0xff] %vm696, %v2052
        %2085 = vst.msk [vmem:[%s315 + $0x30] sm:$0xff] %vm696, %v2053
        %2086 = vst.msk [vmem:[%s315 + $0x38] sm:$0xff] %vm696, %v2054
        %2087 = vst.msk [vmem:[%s315 + $0x40] sm:$0xff] %vm696, %v2055
        %2088 = vst.msk [vmem:[%s315 + $0x48] sm:$0xff] %vm696, %v2056
        %2089 = vst.msk [vmem:[%s315 + $0x50] sm:$0xff] %vm696, %v2057
        %2090 = vst.msk [vmem:[%s315 + $0x58] sm:$0xff] %vm696, %v2058
        %2091 = vst.msk [vmem:[%s315 + $0x60] sm:$0xff] %vm696, %v2059
        %2092 = vst.msk [vmem:[%s315 + $0x68] sm:$0xff] %vm696, %v2060
        %2093 = vst.msk [vmem:[%s315 + $0x70] sm:$0xff] %vm696, %v2061
        %2094 = vst.msk [vmem:[%s315 + $0x78] sm:$0xff] %vm696, %v2062
        %2095 = vst.msk [vmem:[%s315 + $0x80] sm:$0xff] %vm696, %v2063
        %2096 = vst.msk [vmem:[%s315 + $0x88] sm:$0xff] %vm696, %v2064
        %2097 = vst.msk [vmem:[%s315 + $0x90] sm:$0xff] %vm696, %v2065
        %2098 = vst.msk [vmem:[%s315 + $0x98] sm:$0xff] %vm696, %v2066
        %2099 = vst.msk [vmem:[%s315 + $0xa0] sm:$0xff] %vm696, %v2067
        %2100 = vst.msk [vmem:[%s315 + $0xa8] sm:$0xff] %vm696, %v2068
        %2101 = vst.msk [vmem:[%s315 + $0xb0] sm:$0xff] %vm696, %v2069
        %2102 = vst.msk [vmem:[%s315 + $0xb8] sm:$0xff] %vm696, %v2070
        %2103 = vst.msk [vmem:[%s315 + $0xc0] sm:$0xff] %vm696, %v2071
        %2104 = vst.msk [vmem:[%s315 + $0xc8] sm:$0xff] %vm696, %v2072
        %2105 = vst.msk [vmem:[%s315 + $0xd0] sm:$0xff] %vm696, %v2073
        %2106 = vst.msk [vmem:[%s315 + $0xd8] sm:$0xff] %vm696, %v2074
        %2107 = vst.msk [vmem:[%s315 + $0xe0] sm:$0xff] %vm696, %v2075
        %2108 = vst.msk [vmem:[%s315 + $0xe8] sm:$0xff] %vm696, %v2076
        %2109 = vst.msk [vmem:[%s315 + $0xf0] sm:$0xff] %vm696, %v2077
        %2110 = vst.msk [vmem:[%s315 + $0xf8] sm:$0xff] %vm696, %v2078
        %s2111 = sand.u32 %s200, 1
        %s2112 = scalar_lea.sflag [#allocation5], %s2111
        %s2113 = sand.u32 %s200, 1
        %s2114 = smul.addr %s2113, 256
        %s2115 = scalar_lea.vmem [#allocation6], %s2114
        // Predicated region
        $region57: #{_lambda_.1} parent=47 // pred_check
          %p2116 = pneg %p210
        $region58: #{_lambda_.1} parent=47 // pred_check_branch
          %2118 = sbr.rel (%p2116) target = $region60
        $region59: #{_lambda_.1} parent=47 // pred_region
          %s2119 = smul.u32 16, %s29
          %s2121 = ssub.s32 4096, 4096
          %2122 = vsyncadd %s2112, %s2121
          %s2123 = smul.addr %s2119, 2
          %s2124 = smul.addr %s28, 32
          %s2125 = sadd.s32 %s2123, %s2124
          %s2126 = smul.addr %s2125, 128
          %s2127 = scalar_lea.hbm %s7, %s2126
          %s2128 = sshll.u32 %s2115, 4
          %s2129 = int_to_ptr.vmem [resolvable:$true] %s2128
          %2134 = dma.vmem_to_hbm [thread:$0]  %s2129, 4096, %s2127, %s2112, 128, 128, 8
        $region60: #{_lambda_.1} parent=47 // pred_fallthru
          _
      $region48: #{_lambda_.1} parent=5 // pred_fallthru
        _
      %p2135 = scmp.le.s32.totalorder 2, %s19
      // Predicated region
      $region61: #{_lambda_.1} parent=5 // pred_check
        %p2136 = pneg %p2135
      $region62: #{_lambda_.1} parent=5 // pred_check_branch
        %2138 = sbr.rel (%p2136) target = $region64
      $region63: #{_lambda_.1} parent=5 // pred_region
        %s2139 = ssub.s32 %s19, 2
        // Predicated region
        $region65: #{_lambda_.1} parent=63 // pred_check
          %p2140 = pneg %p216
        $region66: #{_lambda_.1} parent=63 // pred_check_branch
          %2142 = sbr.rel (%p2140) target = $region68
        $region67: #{_lambda_.1} parent=63 // pred_region
          %s2143 = sand.u32 %s201, 1
          %s2144 = scalar_lea.sflag [#allocation5], %s2143
          %s2145 = sand.u32 %s201, 1
          %s2146 = smul.addr %s2145, 256
          %s2147 = scalar_lea.vmem [#allocation6], %s2146
          %2148 = dma.done %s2144, 4096
        $region68: #{_lambda_.1} parent=63 // pred_fallthru
          _
      $region64: #{_lambda_.1} parent=5 // pred_fallthru
        _
    $region6: #{_lambda_.1} parent=1 // loop_footer
      %s23 = sadd.s32 1, %s19
    $region7: #{_lambda_.1} parent=1 // loop_footer_branch
      %18 = sbr.rel target = $region3
    $region8: #{_lambda_.1} parent=1 // loop_exit
      _
    %2149 = vsyncpa [#allocation4], 1
    %s2150 = scalar_lea.sflag [#allocation4], 1
    %2151 = vsyncpa %s2150, 1
    %2152 = vsyncpa [#allocation5], 1
    %s2153 = scalar_lea.sflag [#allocation5], 1
    %2154 = vsyncpa %s2153, 1

</llo_original>
